<compile_context>
chip_gen: v5e
topology: v5e:2x2
jax: 0.10.0
libtpu: 0.0.40
codegen_flags: <defaults>
</compile_context>

<pallas_src>
import jax
import jax.numpy as jnp
from jax.experimental import pallas as pl
from jax.experimental.pallas import tpu as pltpu


IN_DIM = 28
IN_PAD = 32            # pad first-layer K to a multiple of 8
H1, H2, H3 = 128, 256, 512
OUT_DIM = 2800
OUT_PAD = 2816         # 22 * 128 -> lane-dense unmasked stores; divides TILE_N


def _round_up(x, m):
    return (x + m - 1) // m * m


def decoder_kernel(x_ref,
                   w1_ref, b1_ref, a1_ref,
                   w2_ref, b2_ref, a2_ref,
                   w3_ref, b3_ref, a3_ref,
                   w4_ref, b4_ref,
                   o_ref,
                   h3_ref):
    """One (batch-tile i, out-tile n) grid step.

    Layers 1-3 depend only on the batch tile, so they run once per batch tile
    (n == 0) into the persistent VMEM scratch h3_ref; every step then performs
    only the layer-4 matmul for its (TILE_M, TILE_N) output slice, which overlaps
    with the streaming DMA of the next w4 N-slice.
    """
    @pl.when(pl.program_id(1) == 0)
    def _():
        h = jnp.dot(x_ref[...], w1_ref[...],
                    preferred_element_type=jnp.float32) + b1_ref[...]
        h = jnp.where(h > 0, h, a1_ref[0] * h)
        h = jnp.dot(h, w2_ref[...],
                    preferred_element_type=jnp.float32) + b2_ref[...]
        h = jnp.where(h > 0, h, a2_ref[0] * h)
        h = jnp.dot(h, w3_ref[...],
                    preferred_element_type=jnp.float32) + b3_ref[...]
        h = jnp.where(h > 0, h, a3_ref[0] * h)
        h3_ref[...] = h

    o_ref[...] = (jnp.dot(h3_ref[...], w4_ref[...],
                          preferred_element_type=jnp.float32)
                  + b4_ref[...]).astype(o_ref.dtype)


def decoder_forward(x, params, *, tile_m=None, tile_n=256):
    """Pallas wrapper. x: [B, 28] float32 -> [B, 2800] float32."""
    B, K = x.shape
    assert K == IN_DIM, K
    assert OUT_PAD % tile_n == 0 and tile_n % 128 == 0

    if tile_m is None:
        # MXU-height tiles for large batches; shrink (multiple of 8) for small ones.
        tile_m = min(128, _round_up(B, 8))
    b_pad = _round_up(B, tile_m)

    f32 = jnp.float32
    # Explicit padding of ragged dims, done once at the wrapper level.
    x_p = jnp.zeros((b_pad, IN_PAD), f32).at[:B, :IN_DIM].set(x.astype(f32))
    w1_p = jnp.zeros((IN_PAD, H1), f32).at[:IN_DIM, :].set(params["w1"])
    w4_p = jnp.zeros((H3, OUT_PAD), f32).at[:, :OUT_DIM].set(params["w4"])
    b4_p = jnp.zeros((1, OUT_PAD), f32).at[:, :OUT_DIM].set(params["b4"])

    grid = (b_pad // tile_m, OUT_PAD // tile_n)

    const = lambda i, n: (0, 0)          # weights/biases of layers 1-3: resident
    smem_scalar = lambda: pl.BlockSpec(memory_space=pltpu.MemorySpace.SMEM)

    out = pl.pallas_call(
        decoder_kernel,
        out_shape=jax.ShapeDtypeStruct((b_pad, OUT_PAD), f32),
        grid=grid,
        in_specs=[
            pl.BlockSpec((tile_m, IN_PAD), lambda i, n: (i, 0)),   # x tile
            pl.BlockSpec((IN_PAD, H1), const),                     # w1
            pl.BlockSpec((1, H1), const),                          # b1
            smem_scalar(),                                         # a1 (SMEM scalar)
            pl.BlockSpec((H1, H2), const),                         # w2
            pl.BlockSpec((1, H2), const),                          # b2
            smem_scalar(),                                         # a2
            pl.BlockSpec((H2, H3), const),                         # w3
            pl.BlockSpec((1, H3), const),                          # b3
            smem_scalar(),                                         # a3
            pl.BlockSpec((H3, tile_n), lambda i, n: (0, n)),       # w4: streamed over N
            pl.BlockSpec((1, tile_n), lambda i, n: (0, n)),        # b4: streamed over N
        ],
        out_specs=pl.BlockSpec((tile_m, tile_n), lambda i, n: (i, n)),
        scratch_shapes=[pltpu.VMEM((tile_m, H3), f32)],            # h3 activations
        compiler_params=pltpu.CompilerParams(
            dimension_semantics=("parallel", "arbitrary"),
        ),
    )(
        x_p,
        w1_p, params["b1"], params["a1"],
        params["w2"], params["b2"], params["a2"],
        params["w3"], params["b3"], params["a3"],
        w4_p, b4_p,
    )
    return out[:B, :OUT_DIM]


def init_params(key):
    """Deterministic synthetic parameters matching nn.Linear / nn.PReLU shapes."""
    dims = [IN_DIM, H1, H2, H3, OUT_DIM]
    params = {}
    keys = jax.random.split(key, 8)
    for i in range(4):
        fan_in, fan_out = dims[i], dims[i + 1]
        bound = 1.0 / jnp.sqrt(jnp.float32(fan_in))
        w = jax.random.uniform(keys[2 * i], (fan_in, fan_out),
                               dtype=jnp.float32, minval=-bound, maxval=bound)
        b = jax.random.uniform(keys[2 * i + 1], (1, fan_out),
                               dtype=jnp.float32, minval=-bound, maxval=bound)
        params[f"w{i + 1}"] = w
        params[f"b{i + 1}"] = b
    # PReLU alphas (single shared scalar each, PyTorch default init 0.25).
    for i in range(3):
        params[f"a{i + 1}"] = jnp.full((1,), 0.25, dtype=jnp.float32)
    return params


def decoder_reference(x, p):
    """Pure-JAX reference for correctness check."""
    h = x @ p["w1"] + p["b1"]
    h = jnp.where(h > 0, h, p["a1"][0] * h)
    h = h @ p["w2"] + p["b2"]
    h = jnp.where(h > 0, h, p["a2"][0] * h)
    h = h @ p["w3"] + p["b3"]
    h = jnp.where(h > 0, h, p["a3"][0] * h)
    return h @ p["w4"] + p["b4"]


if __name__ == "__main__":
    key = jax.random.PRNGKey(0)
    k_params, k_x = jax.random.split(key)

    params = init_params(k_params)
    B = 8
    x = jax.random.normal(k_x, (B, IN_DIM), dtype=jnp.float32)

    out = decoder_forward(x, params)
    out = jax.block_until_ready(out)

    ref = decoder_reference(x, params)
    assert out.shape == (B, OUT_DIM), out.shape
    assert jnp.allclose(out, ref, atol=1e-4, rtol=1e-4), "mismatch vs reference"

    print("KERNEL_OK")
</pallas_src>

<mosaic_0001>
module attributes {stable_mosaic.version = 11 : i64} {
  func.func @decoder_kernel(%arg0: i32, %arg1: i32, %arg2: memref<8x32xf32, #tpu.memory_space<vmem>>, %arg3: memref<32x128xf32, #tpu.memory_space<vmem>>, %arg4: memref<1x128xf32, #tpu.memory_space<vmem>>, %arg5: memref<1xf32, #tpu.memory_space<smem>>, %arg6: memref<128x256xf32, #tpu.memory_space<vmem>>, %arg7: memref<1x256xf32, #tpu.memory_space<vmem>>, %arg8: memref<1xf32, #tpu.memory_space<smem>>, %arg9: memref<256x512xf32, #tpu.memory_space<vmem>>, %arg10: memref<1x512xf32, #tpu.memory_space<vmem>>, %arg11: memref<1xf32, #tpu.memory_space<smem>>, %arg12: memref<512x256xf32, #tpu.memory_space<vmem>>, %arg13: memref<1x256xf32, #tpu.memory_space<vmem>>, %arg14: memref<8x256xf32, #tpu.memory_space<vmem>>, %arg15: memref<8x512xf32, #tpu.memory_space<vmem>>) attributes {dimension_semantics = [#tpu.dimension_semantics<parallel>, #tpu.dimension_semantics<arbitrary>], iteration_bounds = array<i64: 1, 11>, scalar_prefetch = 0 : i64, scratch_operands = 1 : i64, tpu.core_type = #tpu.core_type<tc>, window_params = [{transform_indices = @transform_0, window_bounds = array<i64: 8, 32>}, {pipeline_mode = #tpu.pipeline_mode<synchronous>, transform_indices = @transform_1, window_bounds = array<i64: 32, 128>}, {pipeline_mode = #tpu.pipeline_mode<synchronous>, transform_indices = @transform_2, window_bounds = array<i64: 1, 128>}, {transform_indices = @transform_3, window_bounds = array<i64: 1>}, {pipeline_mode = #tpu.pipeline_mode<synchronous>, transform_indices = @transform_4, window_bounds = array<i64: 128, 256>}, {pipeline_mode = #tpu.pipeline_mode<synchronous>, transform_indices = @transform_5, window_bounds = array<i64: 1, 256>}, {transform_indices = @transform_6, window_bounds = array<i64: 1>}, {pipeline_mode = #tpu.pipeline_mode<synchronous>, transform_indices = @transform_7, window_bounds = array<i64: 256, 512>}, {pipeline_mode = #tpu.pipeline_mode<synchronous>, transform_indices = @transform_8, window_bounds = array<i64: 1, 512>}, {transform_indices = @transform_9, window_bounds = array<i64: 1>}, {transform_indices = @transform_10, window_bounds = array<i64: 512, 256>}, {transform_indices = @transform_11, window_bounds = array<i64: 1, 256>}, {transform_indices = @transform_12, window_bounds = array<i64: 8, 256>}]} {
    %c0_i32 = arith.constant 0 : i32
    %0 = arith.cmpi eq, %arg1, %c0_i32 : i32
    %1 = arith.extui %0 : i1 to i32
    %c0_i32_0 = arith.constant 0 : i32
    %2 = arith.cmpi ne, %1, %c0_i32_0 : i32
    scf.if %2 {
      %c0_8 = arith.constant 0 : index
      %c0_9 = arith.constant 0 : index
      %10 = vector.load %arg2[%c0_8, %c0_9] : memref<8x32xf32, #tpu.memory_space<vmem>>, vector<8x32xf32>
      %c0_10 = arith.constant 0 : index
      %c0_11 = arith.constant 0 : index
      %11 = vector.load %arg3[%c0_10, %c0_11] : memref<32x128xf32, #tpu.memory_space<vmem>>, vector<32x128xf32>
      %cst_12 = arith.constant dense<0.000000e+00> : vector<8x128xf32>
      %12 = tpu.matmul %10, %11, %cst_12 {dimension_numbers = #tpu.dot_dimension_numbers<[1], [0], [0], [1], [0, 0, 1, 1], [], []>} : vector<8x32xf32>, vector<32x128xf32>, vector<8x128xf32> -> vector<8x128xf32>
      %c0_13 = arith.constant 0 : index
      %c0_14 = arith.constant 0 : index
      %13 = vector.load %arg4[%c0_13, %c0_14] : memref<1x128xf32, #tpu.memory_space<vmem>>, vector<1x128xf32>
      %14 = vector.broadcast %13 : vector<1x128xf32> to vector<8x128xf32>
      %15 = arith.addf %12, %14 : vector<8x128xf32>
      %cst_15 = arith.constant 0.000000e+00 : f32
      %16 = vector.broadcast %cst_15 : f32 to vector<8x128xf32>
      %17 = arith.cmpf ogt, %15, %16 : vector<8x128xf32>
      %c0_16 = arith.constant 0 : index
      %18 = memref.load %arg5[%c0_16] : memref<1xf32, #tpu.memory_space<smem>>
      %19 = vector.broadcast %18 : f32 to vector<8x128xf32>
      %20 = arith.mulf %19, %15 : vector<8x128xf32>
      %21 = arith.select %17, %15, %20 : vector<8x128xi1>, vector<8x128xf32>
      %c0_17 = arith.constant 0 : index
      %c0_18 = arith.constant 0 : index
      %22 = vector.load %arg6[%c0_17, %c0_18] : memref<128x256xf32, #tpu.memory_space<vmem>>, vector<128x256xf32>
      %cst_19 = arith.constant dense<0.000000e+00> : vector<8x256xf32>
      %23 = tpu.matmul %21, %22, %cst_19 {dimension_numbers = #tpu.dot_dimension_numbers<[1], [0], [0], [1], [0, 0, 1, 1], [], []>} : vector<8x128xf32>, vector<128x256xf32>, vector<8x256xf32> -> vector<8x256xf32>
      %c0_20 = arith.constant 0 : index
      %c0_21 = arith.constant 0 : index
      %24 = vector.load %arg7[%c0_20, %c0_21] : memref<1x256xf32, #tpu.memory_space<vmem>>, vector<1x256xf32>
      %25 = vector.broadcast %24 : vector<1x256xf32> to vector<8x256xf32>
      %26 = arith.addf %23, %25 : vector<8x256xf32>
      %cst_22 = arith.constant 0.000000e+00 : f32
      %27 = vector.broadcast %cst_22 : f32 to vector<8x256xf32>
      %28 = arith.cmpf ogt, %26, %27 : vector<8x256xf32>
      %c0_23 = arith.constant 0 : index
      %29 = memref.load %arg8[%c0_23] : memref<1xf32, #tpu.memory_space<smem>>
      %30 = vector.broadcast %29 : f32 to vector<8x256xf32>
      %31 = arith.mulf %30, %26 : vector<8x256xf32>
      %32 = arith.select %28, %26, %31 : vector<8x256xi1>, vector<8x256xf32>
      %c0_24 = arith.constant 0 : index
      %c0_25 = arith.constant 0 : index
      %33 = vector.load %arg9[%c0_24, %c0_25] : memref<256x512xf32, #tpu.memory_space<vmem>>, vector<256x512xf32>
      %cst_26 = arith.constant dense<0.000000e+00> : vector<8x512xf32>
      %34 = tpu.matmul %32, %33, %cst_26 {dimension_numbers = #tpu.dot_dimension_numbers<[1], [0], [0], [1], [0, 0, 1, 1], [], []>} : vector<8x256xf32>, vector<256x512xf32>, vector<8x512xf32> -> vector<8x512xf32>
      %c0_27 = arith.constant 0 : index
      %c0_28 = arith.constant 0 : index
      %35 = vector.load %arg10[%c0_27, %c0_28] : memref<1x512xf32, #tpu.memory_space<vmem>>, vector<1x512xf32>
      %36 = vector.broadcast %35 : vector<1x512xf32> to vector<8x512xf32>
      %37 = arith.addf %34, %36 : vector<8x512xf32>
      %cst_29 = arith.constant 0.000000e+00 : f32
      %38 = vector.broadcast %cst_29 : f32 to vector<8x512xf32>
      %39 = arith.cmpf ogt, %37, %38 : vector<8x512xf32>
      %c0_30 = arith.constant 0 : index
      %40 = memref.load %arg11[%c0_30] : memref<1xf32, #tpu.memory_space<smem>>
      %41 = vector.broadcast %40 : f32 to vector<8x512xf32>
      %42 = arith.mulf %41, %37 : vector<8x512xf32>
      %43 = arith.select %39, %37, %42 : vector<8x512xi1>, vector<8x512xf32>
      %c0_31 = arith.constant 0 : index
      %c0_32 = arith.constant 0 : index
      %44 = vector.load %arg15[%c0_31, %c0_32] : memref<8x512xf32, #tpu.memory_space<vmem>>, vector<8x512xf32>
      tpu.vector_store %arg15[%c0_31, %c0_32], %43 {strides = array<i32>} : memref<8x512xf32, #tpu.memory_space<vmem>>, vector<8x512xf32>,
    } else {
    }
    %c0 = arith.constant 0 : index
    %c0_1 = arith.constant 0 : index
    %3 = vector.load %arg15[%c0, %c0_1] : memref<8x512xf32, #tpu.memory_space<vmem>>, vector<8x512xf32>
    %c0_2 = arith.constant 0 : index
    %c0_3 = arith.constant 0 : index
    %4 = vector.load %arg12[%c0_2, %c0_3] : memref<512x256xf32, #tpu.memory_space<vmem>>, vector<512x256xf32>
    %cst = arith.constant dense<0.000000e+00> : vector<8x256xf32>
    %5 = tpu.matmul %3, %4, %cst {dimension_numbers = #tpu.dot_dimension_numbers<[1], [0], [0], [1], [0, 0, 1, 1], [], []>} : vector<8x512xf32>, vector<512x256xf32>, vector<8x256xf32> -> vector<8x256xf32>
    %c0_4 = arith.constant 0 : index
    %c0_5 = arith.constant 0 : index
    %6 = vector.load %arg13[%c0_4, %c0_5] : memref<1x256xf32, #tpu.memory_space<vmem>>, vector<1x256xf32>
    %7 = vector.broadcast %6 : vector<1x256xf32> to vector<8x256xf32>
    %8 = arith.addf %5, %7 : vector<8x256xf32>
    %c0_6 = arith.constant 0 : index
    %c0_7 = arith.constant 0 : index
    %9 = vector.load %arg14[%c0_6, %c0_7] : memref<8x256xf32, #tpu.memory_space<vmem>>, vector<8x256xf32>
    tpu.vector_store %arg14[%c0_6, %c0_7], %8 {strides = array<i32>} : memref<8x256xf32, #tpu.memory_space<vmem>>, vector<8x256xf32>,
    return
  }
  func.func @transform_0(%arg0: i32, %arg1: i32) -> (i32, i32) {
    %c0_i32 = arith.constant 0 : i32
    %c0_i32_0 = arith.constant 0 : i32
    return %arg0, %c0_i32 : i32, i32
  }
  func.func @transform_1(%arg0: i32, %arg1: i32) -> (i32, i32) {
    %c0_i32 = arith.constant 0 : i32
    %c0_i32_0 = arith.constant 0 : i32
    %c0_i32_1 = arith.constant 0 : i32
    return %c0_i32, %c0_i32_0 : i32, i32
  }
  func.func @transform_2(%arg0: i32, %arg1: i32) -> (i32, i32) {
    %c0_i32 = arith.constant 0 : i32
    %c0_i32_0 = arith.constant 0 : i32
    %c0_i32_1 = arith.constant 0 : i32
    return %c0_i32, %c0_i32_0 : i32, i32
  }
  func.func @transform_3(%arg0: i32, %arg1: i32) -> i32 {
    %c0_i32 = arith.constant 0 : i32
    %c0_i32_0 = arith.constant 0 : i32
    return %c0_i32 : i32
  }
  func.func @transform_4(%arg0: i32, %arg1: i32) -> (i32, i32) {
    %c0_i32 = arith.constant 0 : i32
    %c0_i32_0 = arith.constant 0 : i32
    %c0_i32_1 = arith.constant 0 : i32
    return %c0_i32, %c0_i32_0 : i32, i32
  }
  func.func @transform_5(%arg0: i32, %arg1: i32) -> (i32, i32) {
    %c0_i32 = arith.constant 0 : i32
    %c0_i32_0 = arith.constant 0 : i32
    %c0_i32_1 = arith.constant 0 : i32
    return %c0_i32, %c0_i32_0 : i32, i32
  }
  func.func @transform_6(%arg0: i32, %arg1: i32) -> i32 {
    %c0_i32 = arith.constant 0 : i32
    %c0_i32_0 = arith.constant 0 : i32
    return %c0_i32 : i32
  }
  func.func @transform_7(%arg0: i32, %arg1: i32) -> (i32, i32) {
    %c0_i32 = arith.constant 0 : i32
    %c0_i32_0 = arith.constant 0 : i32
    %c0_i32_1 = arith.constant 0 : i32
    return %c0_i32, %c0_i32_0 : i32, i32
  }
  func.func @transform_8(%arg0: i32, %arg1: i32) -> (i32, i32) {
    %c0_i32 = arith.constant 0 : i32
    %c0_i32_0 = arith.constant 0 : i32
    %c0_i32_1 = arith.constant 0 : i32
    return %c0_i32, %c0_i32_0 : i32, i32
  }
  func.func @transform_9(%arg0: i32, %arg1: i32) -> i32 {
    %c0_i32 = arith.constant 0 : i32
    %c0_i32_0 = arith.constant 0 : i32
    return %c0_i32 : i32
  }
  func.func @transform_10(%arg0: i32, %arg1: i32) -> (i32, i32) {
    %c0_i32 = arith.constant 0 : i32
    %c0_i32_0 = arith.constant 0 : i32
    return %c0_i32, %arg1 : i32, i32
  }
  func.func @transform_11(%arg0: i32, %arg1: i32) -> (i32, i32) {
    %c0_i32 = arith.constant 0 : i32
    %c0_i32_0 = arith.constant 0 : i32
    return %c0_i32, %arg1 : i32, i32
  }
  func.func @transform_12(%arg0: i32, %arg1: i32) -> (i32, i32) {
    %c0_i32 = arith.constant 0 : i32
    return %arg0, %arg1 : i32, i32
  }
}

</mosaic_0001>

<llo_original>
// kernel: tpu_custom_call.1
$region0: #{tpu_custom_call.1}
  #allocation0 [shape = 'u32[]', space=smem, size = 0x4, offset = 0x4, fixed_abs, tag = 'smem constant byte address 0x4 - core index']
  #allocation1 [shape = 'u32[72,128]{1,0:T(1,128)}', space=vmem, size = 0x9000, scoped, tag = 'internal scratch']
  #allocation2 [shape = 'f32[8,512]{1,0:T(8,128)}', space=vmem, size = 0x4000, scoped, tag = 'scratch operand']
  #allocation3 [shape = 'f32[1]{0:T(128)S(6)}', space=smem, size = 0x200, scoped, tag = 'scoped memory for tpu_custom_call.1']
  #allocation4 [shape = 'f32[1]{0:T(128)S(6)}', space=smem, size = 0x200, scoped, tag = 'scoped memory for tpu_custom_call.1']
  #allocation5 [shape = 'f32[1]{0:T(128)S(6)}', space=smem, size = 0x200, scoped, tag = 'scoped memory for tpu_custom_call.1']
  %s0 = inlined_call_operand.hbm [shape: f32[8,32], index: 0, kind: input, shape index: {}]
  %s1 = inlined_call_operand.hbm [shape: f32[32,128], index: 1, kind: input, shape index: {}]
  %s2 = inlined_call_operand.hbm [shape: f32[1,128], index: 2, kind: input, shape index: {}]
  %s3 = inlined_call_operand.<no memory space> [shape: f32[1], index: 3, kind: input, shape index: {}]
  %s4 = inlined_call_operand.hbm [shape: f32[128,256], index: 4, kind: input, shape index: {}]
  %s5 = inlined_call_operand.hbm [shape: f32[1,256], index: 5, kind: input, shape index: {}]
  %s6 = inlined_call_operand.<no memory space> [shape: f32[1], index: 6, kind: input, shape index: {}]
  %s7 = inlined_call_operand.hbm [shape: f32[256,512], index: 7, kind: input, shape index: {}]
  %s8 = inlined_call_operand.hbm [shape: f32[1,512], index: 8, kind: input, shape index: {}]
  %s9 = inlined_call_operand.<no memory space> [shape: f32[1], index: 9, kind: input, shape index: {}]
  %s10 = inlined_call_operand.hbm [shape: f32[512,2816], index: 10, kind: input, shape index: {}]
  %s11 = inlined_call_operand.hbm [shape: f32[1,2816], index: 11, kind: input, shape index: {}]
  %s12 = inlined_call_operand.hbm [shape: f32[8,2816], index: 12, kind: output, shape index: {}]
  %s13 = sld [smem:[#allocation0]]
  $region121: #{tpu_custom_call.1} parent=0
    _
  %s15 = ssub.s32 1, %s13
  %s16 = scalar_select 0, %s15, %s13
  %17 = sst [smem:[#allocation3]] %s3
  %18 = sst [smem:[#allocation4]] %s6
  %19 = sst [smem:[#allocation5]] %s9
  $region1: #{tpu_custom_call.1} parent=0
    #allocation6 [shape = 'u8[4096]{0}', space=vmem, size = 0x1000, scoped, tag = 'input window, operand 0, single buffered']
    #allocation7 [shape = 's32[2]{0}', space=sflag, size = 0x8, scoped, tag = 'scoped memory for tpu_custom_call.1']
    #allocation8 [shape = 's32[2]{0}', space=sflag, size = 0x8, scoped, tag = 'scoped memory for tpu_custom_call.1']
    #allocation9 [shape = 'u8[16384]{0}', space=vmem, size = 0x4000, scoped, tag = 'input window, operand 1, single buffered']
    #allocation10 [shape = 's32[1]{0}', space=sflag, size = 0x4, scoped, tag = 'scoped memory for tpu_custom_call.1']
    #allocation11 [shape = 'u8[512]{0}', space=vmem, size = 0x400, scoped, tag = 'input window, operand 2, single buffered']
    #allocation12 [shape = 'u8[131072]{0}', space=vmem, size = 0x20000, scoped, tag = 'input window, operand 4, single buffered']
    #allocation13 [shape = 's32[1]{0}', space=sflag, size = 0x4, scoped, tag = 'scoped memory for tpu_custom_call.1']
    #allocation14 [shape = 'u8[1024]{0}', space=vmem, size = 0x400, scoped, tag = 'input window, operand 5, single buffered']
    #allocation15 [shape = 'u8[524288]{0}', space=vmem, size = 0x80000, scoped, tag = 'input window, operand 7, single buffered']
    #allocation16 [shape = 's32[1]{0}', space=sflag, size = 0x4, scoped, tag = 'scoped memory for tpu_custom_call.1']
    #allocation17 [shape = 'u8[2048]{0}', space=vmem, size = 0x800, scoped, tag = 'input window, operand 8, single buffered']
    #allocation18 [shape = 'u8[1048576]{0}', space=vmem, size = 0x100000, scoped, tag = 'input window, operand 10']
    #allocation19 [shape = 's32[2]{0}', space=sflag, size = 0x8, scoped, tag = 'scoped memory for tpu_custom_call.1']
    #allocation20 [shape = 'u8[2048]{0}', space=vmem, size = 0x800, scoped, tag = 'input window, operand 11']
    #allocation21 [shape = 'u8[16384]{0}', space=vmem, size = 0x4000, scoped, tag = 'output window, operand 0']
    %20 = vsyncpa [#allocation7], 0
    %21 = vsyncpa [#allocation10], 0
    %22 = vsyncpa [#allocation13], 0
    %23 = vsyncpa [#allocation16], 0
    %24 = vsyncpa [#allocation19], 0
    %s25 = scalar_lea.sflag [#allocation19], 1
    %26 = vsyncpa %s25, 0
    %27 = vsyncpa [#allocation8], 0
    %s28 = scalar_lea.sflag [#allocation8], 1
    %29 = vsyncpa %s28, 0
    loop: start=0, step=1, limit=13
    $region2: #{tpu_custom_call.1} parent=1 // loop_pre_header
      _
    $region3: #{tpu_custom_call.1} parent=1 // loop_header
      %s31 = sphi 0, %s35
      %p32 = scmp.ge.s32.totalorder %s31, 13
      %s38 = sphi 0, %s50
      %s39 = sphi 0, %s46
      %s40 = sphi 0, %s38
      %s41 = sphi 0, %s39
      %s42 = sphi 0, %s40
      %s43 = sphi 0, %s41
      %s53 = sphi 0, %s55
      %s56 = sphi 0, %s53
      %s57 = sphi 0, %s56
      %s73 = sphi 0, %s57
      %s77 = sphi 0, %s77
      %s79 = sphi 0, %s77
      %s80 = sphi 0, %s79
      %s94 = sphi 0, %s80
      %s98 = sphi 0, %s98
      %s100 = sphi 0, %s98
      %s101 = sphi 0, %s100
      %s115 = sphi 0, %s101
      %s119 = sphi 0, %s119
      %s121 = sphi 0, %s119
      %s122 = sphi 0, %s121
      %s136 = sphi 0, %s122
      %s140 = sphi 0, %s140
      %s142 = sphi 0, %s140
      %s143 = sphi 0, %s142
      %s157 = sphi 0, %s143
      %s161 = sphi 0, %s161
      %s163 = sphi 0, %s161
      %s164 = sphi 0, %s163
      %s178 = sphi 0, %s164
      %s182 = sphi 0, %s182
      %s184 = sphi 0, %s182
      %s185 = sphi 0, %s184
      %s199 = sphi 0, %s185
      %s203 = sphi 0, %s203
      %s205 = sphi 0, %s203
      %s206 = sphi 0, %s205
      %s220 = sphi 0, %s206
      %s224 = sphi 0, %s224
      %s226 = sphi 0, %s224
      %s227 = sphi 0, %s226
      %s241 = sphi 0, %s227
      %s245 = sphi 0, %s245
      %s247 = sphi 0, %s245
      %s248 = sphi 0, %s247
      %s262 = sphi 0, %s248
      %s268 = sphi 0, %s270
      %s271 = sphi 0, %s268
      %s272 = sphi 0, %s271
      %s288 = sphi 0, %s272
      %s294 = sphi 0, %s296
      %s297 = sphi 0, %s294
      %s298 = sphi 0, %s297
      %s314 = sphi 0, %s298
      %s322 = sphi 0, %s324
      %s325 = sphi 0, %s322
      %s326 = sphi 0, %s325
      %s342 = sphi 0, %s326
    $region4: #{tpu_custom_call.1} parent=1 // loop_header_branch
      %34 = sbr.rel (%p32) target = $region8
    $region5: #{tpu_custom_call.1} parent=1 // loop_body
      %s36 = ssub.s32 %s31, 1
      %s37 = ssub.s32 %s31, 2
      %s44 = sadd.s32 1, %s39
      %p45 = scmp.ge.s32.totalorder %s44, 11
      %s46 = scalar_select %p45, 0, %s44
      %s47 = sadd.s32 1, %s38
      %s48 = scalar_select %p45, %s47, %s38
      %p49 = scmp.ge.s32.totalorder %s48, 1
      %s50 = scalar_select %p49, 0, %s48
      %s51 = ssub.s32 %s38, %s50
      %p52 = scmp.eq.s32.totalorder %s51, 0
      %s54 = sadd.s32 %s53, 1
      %s55 = scalar_select %p52, %s53, %s54
      %p58 = pneg %p52
      %p59 = scmp.eq.s32.totalorder %s31, 10
      %p60 = por %p58, %p59
      %p61 = scmp.ne.s32.totalorder %s53, %s56
      %p62 = scmp.eq.s32.totalorder %s31, 0
      %p63 = por %p61, %p62
      %p64 = scmp.ne.s32.totalorder %s53, %s56
      %p65 = scmp.eq.s32.totalorder %s36, 10
      %p66 = por %p64, %p65
      %p67 = scmp.ne.s32.totalorder %s56, %s57
      %p68 = scmp.eq.s32.totalorder %s36, 0
      %p69 = por %p67, %p68
      %p70 = scmp.ne.s32.totalorder %s56, %s57
      %p71 = scmp.eq.s32.totalorder %s37, 10
      %p72 = por %p70, %p71
      %p74 = scmp.ne.s32.totalorder %s57, %s73
      %p75 = scmp.eq.s32.totalorder %s37, 0
      %p76 = por %p74, %p75
      %s78 = sadd.s32 %s77, 1
      %p81 = scmp.eq.s32.totalorder %s31, 10
      %p82 = scmp.ne.s32.totalorder %s77, %s79
      %p83 = scmp.eq.s32.totalorder %s31, 0
      %p84 = por %p82, %p83
      %p85 = scmp.ne.s32.totalorder %s77, %s79
      %p86 = scmp.eq.s32.totalorder %s36, 10
      %p87 = por %p85, %p86
      %p88 = scmp.ne.s32.totalorder %s79, %s80
      %p89 = scmp.eq.s32.totalorder %s36, 0
      %p90 = por %p88, %p89
      %p91 = scmp.ne.s32.totalorder %s79, %s80
      %p92 = scmp.eq.s32.totalorder %s37, 10
      %p93 = por %p91, %p92
      %p95 = scmp.ne.s32.totalorder %s80, %s94
      %p96 = scmp.eq.s32.totalorder %s37, 0
      %p97 = por %p95, %p96
      %s99 = sadd.s32 %s98, 1
      %p102 = scmp.eq.s32.totalorder %s31, 10
      %p103 = scmp.ne.s32.totalorder %s98, %s100
      %p104 = scmp.eq.s32.totalorder %s31, 0
      %p105 = por %p103, %p104
      %p106 = scmp.ne.s32.totalorder %s98, %s100
      %p107 = scmp.eq.s32.totalorder %s36, 10
      %p108 = por %p106, %p107
      %p109 = scmp.ne.s32.totalorder %s100, %s101
      %p110 = scmp.eq.s32.totalorder %s36, 0
      %p111 = por %p109, %p110
      %p112 = scmp.ne.s32.totalorder %s100, %s101
      %p113 = scmp.eq.s32.totalorder %s37, 10
      %p114 = por %p112, %p113
      %p116 = scmp.ne.s32.totalorder %s101, %s115
      %p117 = scmp.eq.s32.totalorder %s37, 0
      %p118 = por %p116, %p117
      %s120 = sadd.s32 %s119, 1
      %p123 = scmp.eq.s32.totalorder %s31, 10
      %p124 = scmp.ne.s32.totalorder %s119, %s121
      %p125 = scmp.eq.s32.totalorder %s31, 0
      %p126 = por %p124, %p125
      %p127 = scmp.ne.s32.totalorder %s119, %s121
      %p128 = scmp.eq.s32.totalorder %s36, 10
      %p129 = por %p127, %p128
      %p130 = scmp.ne.s32.totalorder %s121, %s122
      %p131 = scmp.eq.s32.totalorder %s36, 0
      %p132 = por %p130, %p131
      %p133 = scmp.ne.s32.totalorder %s121, %s122
      %p134 = scmp.eq.s32.totalorder %s37, 10
      %p135 = por %p133, %p134
      %p137 = scmp.ne.s32.totalorder %s122, %s136
      %p138 = scmp.eq.s32.totalorder %s37, 0
      %p139 = por %p137, %p138
      %s141 = sadd.s32 %s140, 1
      %p144 = scmp.eq.s32.totalorder %s31, 10
      %p145 = scmp.ne.s32.totalorder %s140, %s142
      %p146 = scmp.eq.s32.totalorder %s31, 0
      %p147 = por %p145, %p146
      %p148 = scmp.ne.s32.totalorder %s140, %s142
      %p149 = scmp.eq.s32.totalorder %s36, 10
      %p150 = por %p148, %p149
      %p151 = scmp.ne.s32.totalorder %s142, %s143
      %p152 = scmp.eq.s32.totalorder %s36, 0
      %p153 = por %p151, %p152
      %p154 = scmp.ne.s32.totalorder %s142, %s143
      %p155 = scmp.eq.s32.totalorder %s37, 10
      %p156 = por %p154, %p155
      %p158 = scmp.ne.s32.totalorder %s143, %s157
      %p159 = scmp.eq.s32.totalorder %s37, 0
      %p160 = por %p158, %p159
      %s162 = sadd.s32 %s161, 1
      %p165 = scmp.eq.s32.totalorder %s31, 10
      %p166 = scmp.ne.s32.totalorder %s161, %s163
      %p167 = scmp.eq.s32.totalorder %s31, 0
      %p168 = por %p166, %p167
      %p169 = scmp.ne.s32.totalorder %s161, %s163
      %p170 = scmp.eq.s32.totalorder %s36, 10
      %p171 = por %p169, %p170
      %p172 = scmp.ne.s32.totalorder %s163, %s164
      %p173 = scmp.eq.s32.totalorder %s36, 0
      %p174 = por %p172, %p173
      %p175 = scmp.ne.s32.totalorder %s163, %s164
      %p176 = scmp.eq.s32.totalorder %s37, 10
      %p177 = por %p175, %p176
      %p179 = scmp.ne.s32.totalorder %s164, %s178
      %p180 = scmp.eq.s32.totalorder %s37, 0
      %p181 = por %p179, %p180
      %s183 = sadd.s32 %s182, 1
      %p186 = scmp.eq.s32.totalorder %s31, 10
      %p187 = scmp.ne.s32.totalorder %s182, %s184
      %p188 = scmp.eq.s32.totalorder %s31, 0
      %p189 = por %p187, %p188
      %p190 = scmp.ne.s32.totalorder %s182, %s184
      %p191 = scmp.eq.s32.totalorder %s36, 10
      %p192 = por %p190, %p191
      %p193 = scmp.ne.s32.totalorder %s184, %s185
      %p194 = scmp.eq.s32.totalorder %s36, 0
      %p195 = por %p193, %p194
      %p196 = scmp.ne.s32.totalorder %s184, %s185
      %p197 = scmp.eq.s32.totalorder %s37, 10
      %p198 = por %p196, %p197
      %p200 = scmp.ne.s32.totalorder %s185, %s199
      %p201 = scmp.eq.s32.totalorder %s37, 0
      %p202 = por %p200, %p201
      %s204 = sadd.s32 %s203, 1
      %p207 = scmp.eq.s32.totalorder %s31, 10
      %p208 = scmp.ne.s32.totalorder %s203, %s205
      %p209 = scmp.eq.s32.totalorder %s31, 0
      %p210 = por %p208, %p209
      %p211 = scmp.ne.s32.totalorder %s203, %s205
      %p212 = scmp.eq.s32.totalorder %s36, 10
      %p213 = por %p211, %p212
      %p214 = scmp.ne.s32.totalorder %s205, %s206
      %p215 = scmp.eq.s32.totalorder %s36, 0
      %p216 = por %p214, %p215
      %p217 = scmp.ne.s32.totalorder %s205, %s206
      %p218 = scmp.eq.s32.totalorder %s37, 10
      %p219 = por %p217, %p218
      %p221 = scmp.ne.s32.totalorder %s206, %s220
      %p222 = scmp.eq.s32.totalorder %s37, 0
      %p223 = por %p221, %p222
      %s225 = sadd.s32 %s224, 1
      %p228 = scmp.eq.s32.totalorder %s31, 10
      %p229 = scmp.ne.s32.totalorder %s224, %s226
      %p230 = scmp.eq.s32.totalorder %s31, 0
      %p231 = por %p229, %p230
      %p232 = scmp.ne.s32.totalorder %s224, %s226
      %p233 = scmp.eq.s32.totalorder %s36, 10
      %p234 = por %p232, %p233
      %p235 = scmp.ne.s32.totalorder %s226, %s227
      %p236 = scmp.eq.s32.totalorder %s36, 0
      %p237 = por %p235, %p236
      %p238 = scmp.ne.s32.totalorder %s226, %s227
      %p239 = scmp.eq.s32.totalorder %s37, 10
      %p240 = por %p238, %p239
      %p242 = scmp.ne.s32.totalorder %s227, %s241
      %p243 = scmp.eq.s32.totalorder %s37, 0
      %p244 = por %p242, %p243
      %s246 = sadd.s32 %s245, 1
      %p249 = scmp.eq.s32.totalorder %s31, 10
      %p250 = scmp.ne.s32.totalorder %s245, %s247
      %p251 = scmp.eq.s32.totalorder %s31, 0
      %p252 = por %p250, %p251
      %p253 = scmp.ne.s32.totalorder %s245, %s247
      %p254 = scmp.eq.s32.totalorder %s36, 10
      %p255 = por %p253, %p254
      %p256 = scmp.ne.s32.totalorder %s247, %s248
      %p257 = scmp.eq.s32.totalorder %s36, 0
      %p258 = por %p256, %p257
      %p259 = scmp.ne.s32.totalorder %s247, %s248
      %p260 = scmp.eq.s32.totalorder %s37, 10
      %p261 = por %p259, %p260
      %p263 = scmp.ne.s32.totalorder %s248, %s262
      %p264 = scmp.eq.s32.totalorder %s37, 0
      %p265 = por %p263, %p264
      %s266 = ssub.s32 %s39, %s46
      %p267 = scmp.eq.s32.totalorder %s266, 0
      %s269 = sadd.s32 %s268, 1
      %s270 = scalar_select %p267, %s268, %s269
      %p273 = pneg %p267
      %p274 = scmp.eq.s32.totalorder %s31, 10
      %p275 = por %p273, %p274
      %p276 = scmp.ne.s32.totalorder %s268, %s271
      %p277 = scmp.eq.s32.totalorder %s31, 0
      %p278 = por %p276, %p277
      %p279 = scmp.ne.s32.totalorder %s268, %s271
      %p280 = scmp.eq.s32.totalorder %s36, 10
      %p281 = por %p279, %p280
      %p282 = scmp.ne.s32.totalorder %s271, %s272
      %p283 = scmp.eq.s32.totalorder %s36, 0
      %p284 = por %p282, %p283
      %p285 = scmp.ne.s32.totalorder %s271, %s272
      %p286 = scmp.eq.s32.totalorder %s37, 10
      %p287 = por %p285, %p286
      %p289 = scmp.ne.s32.totalorder %s272, %s288
      %p290 = scmp.eq.s32.totalorder %s37, 0
      %p291 = por %p289, %p290
      %s292 = ssub.s32 %s39, %s46
      %p293 = scmp.eq.s32.totalorder %s292, 0
      %s295 = sadd.s32 %s294, 1
      %s296 = scalar_select %p293, %s294, %s295
      %p299 = pneg %p293
      %p300 = scmp.eq.s32.totalorder %s31, 10
      %p301 = por %p299, %p300
      %p302 = scmp.ne.s32.totalorder %s294, %s297
      %p303 = scmp.eq.s32.totalorder %s31, 0
      %p304 = por %p302, %p303
      %p305 = scmp.ne.s32.totalorder %s294, %s297
      %p306 = scmp.eq.s32.totalorder %s36, 10
      %p307 = por %p305, %p306
      %p308 = scmp.ne.s32.totalorder %s297, %s298
      %p309 = scmp.eq.s32.totalorder %s36, 0
      %p310 = por %p308, %p309
      %p311 = scmp.ne.s32.totalorder %s297, %s298
      %p312 = scmp.eq.s32.totalorder %s37, 10
      %p313 = por %p311, %p312
      %p315 = scmp.ne.s32.totalorder %s298, %s314
      %p316 = scmp.eq.s32.totalorder %s37, 0
      %p317 = por %p315, %p316
      %s318 = ssub.s32 %s38, %s50
      %s319 = ssub.s32 %s39, %s46
      %s320 = sor.u32 %s318, %s319
      %p321 = scmp.eq.s32.totalorder %s320, 0
      %s323 = sadd.s32 %s322, 1
      %s324 = scalar_select %p321, %s322, %s323
      %p327 = pneg %p321
      %p328 = scmp.eq.s32.totalorder %s31, 10
      %p329 = por %p327, %p328
      %p330 = scmp.ne.s32.totalorder %s322, %s325
      %p331 = scmp.eq.s32.totalorder %s31, 0
      %p332 = por %p330, %p331
      %p333 = scmp.ne.s32.totalorder %s322, %s325
      %p334 = scmp.eq.s32.totalorder %s36, 10
      %p335 = por %p333, %p334
      %p336 = scmp.ne.s32.totalorder %s325, %s326
      %p337 = scmp.eq.s32.totalorder %s36, 0
      %p338 = por %p336, %p337
      %p339 = scmp.ne.s32.totalorder %s325, %s326
      %p340 = scmp.eq.s32.totalorder %s37, 10
      %p341 = por %p339, %p340
      %p343 = scmp.ne.s32.totalorder %s326, %s342
      %p344 = scmp.eq.s32.totalorder %s37, 0
      %p345 = por %p343, %p344
      %p346 = scmp.le.s32.totalorder 1, %s31
      %p347 = scmp.lt.s32.totalorder %s31, 12
      %p348 = pnand %p346, %p347
      %p349 = pneg %p348
      // Predicated region
      $region9: #{tpu_custom_call.1} parent=5 // pred_check
        _
      $region10: #{tpu_custom_call.1} parent=5 // pred_check_branch
        %351 = sbr.rel (%p348) target = $region12
      $region11: #{tpu_custom_call.1} parent=5 // pred_region
        %s352 = ssub.s32 %s31, 1
        // Predicated region
        $region13: #{tpu_custom_call.1} parent=11 // pred_check
          %p353 = pneg %p69
        $region14: #{tpu_custom_call.1} parent=11 // pred_check_branch
          %355 = sbr.rel (%p353) target = $region16
        $region15: #{tpu_custom_call.1} parent=11 // pred_region
          %357 = vsyncadd [#allocation7], 0
          %s358 = smul.addr %s40, 8
          %s359 = scalar_lea.hbm %s0, %s358
          %s361 = sshll.u32 %s359, 4
          %s362 = int_to_ptr.hbm [resolvable:$true] %s361
          %s363 = sshll.u32 [#allocation6], 4
          %s364 = int_to_ptr.vmem [resolvable:$true] %s363
          %366 = dma.hbm_to_vmem [thread:$0]  %s362, 128, %s364, [#allocation7]
        $region16: #{tpu_custom_call.1} parent=11 // pred_fallthru
          _
        // Predicated region
        $region17: #{tpu_custom_call.1} parent=11 // pred_check
          %p367 = pneg %p90
        $region18: #{tpu_custom_call.1} parent=11 // pred_check_branch
          %369 = sbr.rel (%p367) target = $region20
        $region19: #{tpu_custom_call.1} parent=11 // pred_region
          %371 = vsyncadd [#allocation10], 0
          %s372 = sshll.u32 %s1, 4
          %s373 = int_to_ptr.hbm [resolvable:$true] %s372
          %s374 = sshll.u32 [#allocation9], 4
          %s375 = int_to_ptr.vmem [resolvable:$true] %s374
          %380 = dma.hbm_to_vmem [thread:$0]  %s373, 512, %s375, [#allocation10], 128, 128, 8
        $region20: #{tpu_custom_call.1} parent=11 // pred_fallthru
          _
        // Predicated region
        $region21: #{tpu_custom_call.1} parent=11 // pred_check
          %p381 = pneg %p111
        $region22: #{tpu_custom_call.1} parent=11 // pred_check_branch
          %383 = sbr.rel (%p381) target = $region24
        $region23: #{tpu_custom_call.1} parent=11 // pred_region
          %385 = vsyncadd [#allocation10], 0
          %s387 = sshll.u32 %s2, 4
          %s388 = int_to_ptr.hbm [resolvable:$true] %s387
          %s389 = sshll.u32 [#allocation11], 4
          %s390 = int_to_ptr.vmem [resolvable:$true] %s389
          %392 = dma.hbm_to_vmem [thread:$0]  %s388, 16, %s390, [#allocation10]
        $region24: #{tpu_custom_call.1} parent=11 // pred_fallthru
          _
        // Predicated region
        $region25: #{tpu_custom_call.1} parent=11 // pred_check
          %p393 = pneg %p132
        $region26: #{tpu_custom_call.1} parent=11 // pred_check_branch
          %395 = sbr.rel (%p393) target = $region28
        $region27: #{tpu_custom_call.1} parent=11 // pred_region
          _
        $region28: #{tpu_custom_call.1} parent=11 // pred_fallthru
          _
        // Predicated region
        $region29: #{tpu_custom_call.1} parent=11 // pred_check
          %p396 = pneg %p153
        $region30: #{tpu_custom_call.1} parent=11 // pred_check_branch
          %398 = sbr.rel (%p396) target = $region32
        $region31: #{tpu_custom_call.1} parent=11 // pred_region
          %400 = vsyncadd [#allocation13], 0
          %s401 = sshll.u32 %s4, 4
          %s402 = int_to_ptr.hbm [resolvable:$true] %s401
          %s403 = sshll.u32 [#allocation12], 4
          %s404 = int_to_ptr.vmem [resolvable:$true] %s403
          %409 = dma.hbm_to_vmem [thread:$0]  %s402, 4096, %s404, [#allocation13], 256, 256, 16
        $region32: #{tpu_custom_call.1} parent=11 // pred_fallthru
          _
        // Predicated region
        $region33: #{tpu_custom_call.1} parent=11 // pred_check
          %p410 = pneg %p174
        $region34: #{tpu_custom_call.1} parent=11 // pred_check_branch
          %412 = sbr.rel (%p410) target = $region36
        $region35: #{tpu_custom_call.1} parent=11 // pred_region
          %414 = vsyncadd [#allocation13], 0
          %s416 = sshll.u32 %s5, 4
          %s417 = int_to_ptr.hbm [resolvable:$true] %s416
          %s418 = sshll.u32 [#allocation14], 4
          %s419 = int_to_ptr.vmem [resolvable:$true] %s418
          %421 = dma.hbm_to_vmem [thread:$0]  %s417, 32, %s419, [#allocation13]
        $region36: #{tpu_custom_call.1} parent=11 // pred_fallthru
          _
        // Predicated region
        $region37: #{tpu_custom_call.1} parent=11 // pred_check
          %p422 = pneg %p195
        $region38: #{tpu_custom_call.1} parent=11 // pred_check_branch
          %424 = sbr.rel (%p422) target = $region40
        $region39: #{tpu_custom_call.1} parent=11 // pred_region
          _
        $region40: #{tpu_custom_call.1} parent=11 // pred_fallthru
          _
        // Predicated region
        $region41: #{tpu_custom_call.1} parent=11 // pred_check
          %p425 = pneg %p216
        $region42: #{tpu_custom_call.1} parent=11 // pred_check_branch
          %427 = sbr.rel (%p425) target = $region44
        $region43: #{tpu_custom_call.1} parent=11 // pred_region
          %429 = vsyncadd [#allocation16], 0
          %s430 = sshll.u32 %s7, 4
          %s431 = int_to_ptr.hbm [resolvable:$true] %s430
          %s432 = sshll.u32 [#allocation15], 4
          %s433 = int_to_ptr.vmem [resolvable:$true] %s432
          %438 = dma.hbm_to_vmem [thread:$0]  %s431, 16384, %s433, [#allocation16], 512, 512, 32
        $region44: #{tpu_custom_call.1} parent=11 // pred_fallthru
          _
        // Predicated region
        $region45: #{tpu_custom_call.1} parent=11 // pred_check
          %p439 = pneg %p237
        $region46: #{tpu_custom_call.1} parent=11 // pred_check_branch
          %441 = sbr.rel (%p439) target = $region48
        $region47: #{tpu_custom_call.1} parent=11 // pred_region
          %443 = vsyncadd [#allocation16], 0
          %s445 = sshll.u32 %s8, 4
          %s446 = int_to_ptr.hbm [resolvable:$true] %s445
          %s447 = sshll.u32 [#allocation17], 4
          %s448 = int_to_ptr.vmem [resolvable:$true] %s447
          %450 = dma.hbm_to_vmem [thread:$0]  %s446, 64, %s448, [#allocation16]
        $region48: #{tpu_custom_call.1} parent=11 // pred_fallthru
          _
        // Predicated region
        $region49: #{tpu_custom_call.1} parent=11 // pred_check
          %p451 = pneg %p258
        $region50: #{tpu_custom_call.1} parent=11 // pred_check_branch
          %453 = sbr.rel (%p451) target = $region52
        $region51: #{tpu_custom_call.1} parent=11 // pred_region
          _
        $region52: #{tpu_custom_call.1} parent=11 // pred_fallthru
          _
      $region12: #{tpu_custom_call.1} parent=5 // pred_fallthru
        _
      %p454 = scmp.lt.s32.totalorder %s31, 11
      // Predicated region
      $region53: #{tpu_custom_call.1} parent=5 // pred_check
        %p455 = pneg %p454
      $region54: #{tpu_custom_call.1} parent=5 // pred_check_branch
        %457 = sbr.rel (%p455) target = $region56
      $region55: #{tpu_custom_call.1} parent=5 // pred_region
        // Predicated region
        $region57: #{tpu_custom_call.1} parent=55 // pred_check
          %p458 = pneg %p278
        $region58: #{tpu_custom_call.1} parent=55 // pred_check_branch
          %460 = sbr.rel (%p458) target = $region60
        $region59: #{tpu_custom_call.1} parent=55 // pred_region
          %s461 = sand.u32 %s31, 1
          %s462 = scalar_lea.sflag [#allocation19], %s461
          %s463 = sand.u32 %s268, 1
          %s464 = smul.addr %s463, 1024
          %s465 = scalar_lea.vmem [#allocation18], %s464
          %s466 = smul.u32 2, %s39
          %468 = vsyncadd %s462, 0
          %s469 = smul.addr %s466, 8
          %s470 = scalar_lea.hbm %s10, %s469
          %s471 = sshll.u32 %s470, 4
          %s472 = int_to_ptr.hbm [resolvable:$true] %s471
          %s473 = sshll.u32 %s465, 4
          %s474 = int_to_ptr.vmem [resolvable:$true] %s473
          %479 = dma.hbm_to_vmem [thread:$0]  %s472, 16384, %s474, %s462, 2816, 256, 16
        $region60: #{tpu_custom_call.1} parent=55 // pred_fallthru
          _
        // Predicated region
        $region61: #{tpu_custom_call.1} parent=55 // pred_check
          %p480 = pneg %p304
        $region62: #{tpu_custom_call.1} parent=55 // pred_check_branch
          %482 = sbr.rel (%p480) target = $region64
        $region63: #{tpu_custom_call.1} parent=55 // pred_region
          %s483 = sand.u32 %s31, 1
          %s484 = scalar_lea.sflag [#allocation19], %s483
          %s485 = sand.u32 %s294, 1
          %s486 = smul.addr %s485, 2
          %s487 = scalar_lea.vmem [#allocation20], %s486
          %s488 = smul.u32 2, %s39
          %490 = vsyncadd %s484, 0
          %s491 = scalar_lea.hbm %s11, %s488
          %s493 = sshll.u32 %s491, 4
          %s494 = int_to_ptr.hbm [resolvable:$true] %s493
          %s495 = sshll.u32 %s487, 4
          %s496 = int_to_ptr.vmem [resolvable:$true] %s495
          %498 = dma.hbm_to_vmem [thread:$0]  %s494, 32, %s496, %s484
        $region64: #{tpu_custom_call.1} parent=55 // pred_fallthru
          _
      $region56: #{tpu_custom_call.1} parent=5 // pred_fallthru
        _
      %p499 = scmp.le.s32.totalorder 1, %s31
      %p500 = scmp.lt.s32.totalorder %s31, 12
      %p501 = pnand %p499, %p500
      %p502 = pneg %p501
      // Predicated region
      $region65: #{tpu_custom_call.1} parent=5 // pred_check
        _
      $region66: #{tpu_custom_call.1} parent=5 // pred_check_branch
        %504 = sbr.rel (%p501) target = $region68
      $region67: #{tpu_custom_call.1} parent=5 // pred_region
        %s505 = ssub.s32 %s31, 1
        // Predicated region
        $region69: #{tpu_custom_call.1} parent=67 // pred_check
          %p506 = pneg %p69
        $region70: #{tpu_custom_call.1} parent=67 // pred_check_branch
          %508 = sbr.rel (%p506) target = $region72
        $region71: #{tpu_custom_call.1} parent=67 // pred_region
          %510 = dma.done [#allocation7], 128
        $region72: #{tpu_custom_call.1} parent=67 // pred_fallthru
          _
        // Predicated region
        $region73: #{tpu_custom_call.1} parent=67 // pred_check
          %p511 = pneg %p90
        $region74: #{tpu_custom_call.1} parent=67 // pred_check_branch
          %513 = sbr.rel (%p511) target = $region76
        $region75: #{tpu_custom_call.1} parent=67 // pred_region
          %515 = dma.done [#allocation10], 512
        $region76: #{tpu_custom_call.1} parent=67 // pred_fallthru
          _
        // Predicated region
        $region77: #{tpu_custom_call.1} parent=67 // pred_check
          %p516 = pneg %p111
        $region78: #{tpu_custom_call.1} parent=67 // pred_check_branch
          %518 = sbr.rel (%p516) target = $region80
        $region79: #{tpu_custom_call.1} parent=67 // pred_region
          %520 = dma.done [#allocation10], 16
        $region80: #{tpu_custom_call.1} parent=67 // pred_fallthru
          _
        // Predicated region
        $region81: #{tpu_custom_call.1} parent=67 // pred_check
          %p521 = pneg %p153
        $region82: #{tpu_custom_call.1} parent=67 // pred_check_branch
          %523 = sbr.rel (%p521) target = $region84
        $region83: #{tpu_custom_call.1} parent=67 // pred_region
          %525 = dma.done [#allocation13], 4096
        $region84: #{tpu_custom_call.1} parent=67 // pred_fallthru
          _
        // Predicated region
        $region85: #{tpu_custom_call.1} parent=67 // pred_check
          %p526 = pneg %p174
        $region86: #{tpu_custom_call.1} parent=67 // pred_check_branch
          %528 = sbr.rel (%p526) target = $region88
        $region87: #{tpu_custom_call.1} parent=67 // pred_region
          %530 = dma.done [#allocation13], 32
        $region88: #{tpu_custom_call.1} parent=67 // pred_fallthru
          _
        // Predicated region
        $region89: #{tpu_custom_call.1} parent=67 // pred_check
          %p531 = pneg %p216
        $region90: #{tpu_custom_call.1} parent=67 // pred_check_branch
          %533 = sbr.rel (%p531) target = $region92
        $region91: #{tpu_custom_call.1} parent=67 // pred_region
          %535 = dma.done [#allocation16], 16384
        $region92: #{tpu_custom_call.1} parent=67 // pred_fallthru
          _
        // Predicated region
        $region93: #{tpu_custom_call.1} parent=67 // pred_check
          %p536 = pneg %p237
        $region94: #{tpu_custom_call.1} parent=67 // pred_check_branch
          %538 = sbr.rel (%p536) target = $region96
        $region95: #{tpu_custom_call.1} parent=67 // pred_region
          %540 = dma.done [#allocation16], 64
        $region96: #{tpu_custom_call.1} parent=67 // pred_fallthru
          _
        %s541 = sand.u32 %s36, 1
        %s542 = scalar_lea.sflag [#allocation19], %s541
        %s543 = sand.u32 %s271, 1
        %s544 = smul.addr %s543, 1024
        %s545 = scalar_lea.vmem [#allocation18], %s544
        // Predicated region
        $region97: #{tpu_custom_call.1} parent=67 // pred_check
          %p546 = pneg %p284
        $region98: #{tpu_custom_call.1} parent=67 // pred_check_branch
          %548 = sbr.rel (%p546) target = $region100
        $region99: #{tpu_custom_call.1} parent=67 // pred_region
          %550 = dma.done %s542, 16384
        $region100: #{tpu_custom_call.1} parent=67 // pred_fallthru
          _
        %s551 = sand.u32 %s36, 1
        %s552 = scalar_lea.sflag [#allocation19], %s551
        %s553 = sand.u32 %s297, 1
        %s554 = smul.addr %s553, 2
        %s555 = scalar_lea.vmem [#allocation20], %s554
        // Predicated region
        $region101: #{tpu_custom_call.1} parent=67 // pred_check
          %p556 = pneg %p310
        $region102: #{tpu_custom_call.1} parent=67 // pred_check_branch
          %558 = sbr.rel (%p556) target = $region104
        $region103: #{tpu_custom_call.1} parent=67 // pred_region
          %560 = dma.done %s552, 32
        $region104: #{tpu_custom_call.1} parent=67 // pred_fallthru
          _
        %p561 = pneg %p69
        %p562 = pneg %p66
        %p563 = pneg %p90
        %p564 = pneg %p87
        %p565 = pneg %p111
        %p566 = pneg %p108
        %p567 = pneg %p132
        %p568 = pneg %p129
        %p569 = pneg %p153
        %p570 = pneg %p150
        %p571 = pneg %p174
        %p572 = pneg %p171
        %p573 = pneg %p195
        %p574 = pneg %p192
        %p575 = pneg %p216
        %p576 = pneg %p213
        %p577 = pneg %p237
        %p578 = pneg %p234
        %p579 = pneg %p258
        %p580 = pneg %p255
        %s581 = sand.u32 %s36, 1
        %s582 = scalar_lea.sflag [#allocation19], %s581
        %s583 = sand.u32 %s271, 1
        %s584 = smul.addr %s583, 1024
        %s585 = scalar_lea.vmem [#allocation18], %s584
        %p586 = pneg %p284
        %p587 = pneg %p281
        %s588 = sand.u32 %s36, 1
        %s589 = scalar_lea.sflag [#allocation19], %s588
        %s590 = sand.u32 %s297, 1
        %s591 = smul.addr %s590, 2
        %s592 = scalar_lea.vmem [#allocation20], %s591
        %p593 = pneg %p310
        %p594 = pneg %p307
        %p595 = pneg %p338
        %p596 = pneg %p335
        %s597 = sand.u32 %s325, 1
        %s598 = scalar_lea.sflag [#allocation8], %s597
        %s599 = sand.u32 %s325, 1
        %s600 = smul.addr %s599, 16
        %s601 = scalar_lea.vmem [#allocation21], %s600
        %s602 = smul.u32 2, %s41
        %s603 = smul.u32 2, %s41
        %s604 = smul.u32 2, %s41
        %p605 = scmp.eq.s32.totalorder %s41, 0
        // Predicated region
        $region105: #{tpu_custom_call.1} parent=67 // pred_check
          %p606 = pneg %p605
        $region106: #{tpu_custom_call.1} parent=67 // pred_check_branch
          %608 = sbr.rel (%p606) target = $region108
        $region107: #{tpu_custom_call.1} parent=67 // pred_region
          %v609 = vld [vmem:[#allocation6] sm:$0xff]
          %v610 = vld [vmem:[#allocation9] sm:$0xff]
          %v611 = vld [vmem:[#allocation9 + $0x8] sm:$0xff]
          %v612 = vld [vmem:[#allocation9 + $0x10] sm:$0xff]
          %v613 = vld [vmem:[#allocation9 + $0x18] sm:$0xff]
          %v614 = vld [vmem:[#allocation11] sm:$0x1]
          %v616 = vperm.slane %v614, 0
          %vm618 = vcmask 261120
          %v620 = vsel %vm618, %v609, 0
          %622 = vmatpush.msra.mxu0 0.0
          %623 = vmatpush.msra.mxu0 0.0
          %624 = vmatpush.msra.mxu0 0.0
          %625 = vmatpush.msra.mxu0 0.0
          %626 = vmatpush.msra.mxu0 0.0
          %627 = vmatpush.msra.mxu0 0.0
          %628 = vmatpush.msra.mxu0 0.0
          %629 = vmatpush.msra.mxu0 0.0
          %630 = vmatpush.msra.mxu0 0.0
          %631 = vmatpush.msra.mxu0 0.0
          %632 = vmatpush.msra.mxu0 0.0
          %633 = vmatpush.msra.mxu0 0.0
          %634 = vmatpush.msra.mxu0 %v613
          %635 = vmatpush.msra.mxu0 %v612
          %636 = vmatpush.msra.mxu0 %v611
          %637 = vmatpush.msra.mxu0 %v610
          %638 = vmatmul.f32.gmra.mxu0 %v620
          %v639 = vpop.f32.mrf.mxu0
          %v640 = vadd.f32 %v616, %v639
          %641 = vdwg.mxu0
          %vm642 = vcmp.gt.f32.partialorder %v640, 0.0
          %s643 = sld [smem:[#allocation3]]
          %v644 = vstv %s643
          %v645 = vmul.f32 %v644, %v640
          %v646 = vsel %vm642, %v640, %v645
          %v647 = vld [vmem:[#allocation12] sm:$0xff]
          %v648 = vld [vmem:[#allocation12 + $0x8] sm:$0xff]
          %v649 = vld [vmem:[#allocation12 + $0x10] sm:$0xff]
          %v650 = vld [vmem:[#allocation12 + $0x18] sm:$0xff]
          %v651 = vld [vmem:[#allocation12 + $0x20] sm:$0xff]
          %v652 = vld [vmem:[#allocation12 + $0x28] sm:$0xff]
          %v653 = vld [vmem:[#allocation12 + $0x30] sm:$0xff]
          %v654 = vld [vmem:[#allocation12 + $0x38] sm:$0xff]
          %v655 = vld [vmem:[#allocation12 + $0x40] sm:$0xff]
          %v656 = vld [vmem:[#allocation12 + $0x48] sm:$0xff]
          %v657 = vld [vmem:[#allocation12 + $0x50] sm:$0xff]
          %v658 = vld [vmem:[#allocation12 + $0x58] sm:$0xff]
          %v659 = vld [vmem:[#allocation12 + $0x60] sm:$0xff]
          %v660 = vld [vmem:[#allocation12 + $0x68] sm:$0xff]
          %v661 = vld [vmem:[#allocation12 + $0x70] sm:$0xff]
          %v662 = vld [vmem:[#allocation12 + $0x78] sm:$0xff]
          %v663 = vld [vmem:[#allocation12 + $0x80] sm:$0xff]
          %v664 = vld [vmem:[#allocation12 + $0x88] sm:$0xff]
          %v665 = vld [vmem:[#allocation12 + $0x90] sm:$0xff]
          %v666 = vld [vmem:[#allocation12 + $0x98] sm:$0xff]
          %v667 = vld [vmem:[#allocation12 + $0xa0] sm:$0xff]
          %v668 = vld [vmem:[#allocation12 + $0xa8] sm:$0xff]
          %v669 = vld [vmem:[#allocation12 + $0xb0] sm:$0xff]
          %v670 = vld [vmem:[#allocation12 + $0xb8] sm:$0xff]
          %v671 = vld [vmem:[#allocation12 + $0xc0] sm:$0xff]
          %v672 = vld [vmem:[#allocation12 + $0xc8] sm:$0xff]
          %v673 = vld [vmem:[#allocation12 + $0xd0] sm:$0xff]
          %v674 = vld [vmem:[#allocation12 + $0xd8] sm:$0xff]
          %v675 = vld [vmem:[#allocation12 + $0xe0] sm:$0xff]
          %v676 = vld [vmem:[#allocation12 + $0xe8] sm:$0xff]
          %v677 = vld [vmem:[#allocation12 + $0xf0] sm:$0xff]
          %v678 = vld [vmem:[#allocation12 + $0xf8] sm:$0xff]
          %v679 = vld [vmem:[#allocation14] sm:$0x3]
          %v681 = vperm.slane %v679, 0
          %v682 = vperm.slane %v679, 1
          %685 = vmatpush.msra.mxu0 %v677
          %686 = vmatpush.msra.mxu0 %v675
          %687 = vmatpush.msra.mxu0 %v673
          %688 = vmatpush.msra.mxu0 %v671
          %689 = vmatpush.msra.mxu0 %v669
          %690 = vmatpush.msra.mxu0 %v667
          %691 = vmatpush.msra.mxu0 %v665
          %692 = vmatpush.msra.mxu0 %v663
          %693 = vmatpush.msra.mxu0 %v661
          %694 = vmatpush.msra.mxu0 %v659
          %695 = vmatpush.msra.mxu0 %v657
          %696 = vmatpush.msra.mxu0 %v655
          %697 = vmatpush.msra.mxu0 %v653
          %698 = vmatpush.msra.mxu0 %v651
          %699 = vmatpush.msra.mxu0 %v649
          %700 = vmatpush.msra.mxu0 %v647
          %701 = vmatmul.f32.gmra.mxu0 %v646
          %v702 = vpop.f32.mrf.mxu0
          %v703 = vadd.f32 %v681, %v702
          %704 = vdwg.mxu0
          %705 = vmatpush.msra.mxu0 %v678
          %706 = vmatpush.msra.mxu0 %v676
          %707 = vmatpush.msra.mxu0 %v674
          %708 = vmatpush.msra.mxu0 %v672
          %709 = vmatpush.msra.mxu0 %v670
          %710 = vmatpush.msra.mxu0 %v668
          %711 = vmatpush.msra.mxu0 %v666
          %712 = vmatpush.msra.mxu0 %v664
          %713 = vmatpush.msra.mxu0 %v662
          %714 = vmatpush.msra.mxu0 %v660
          %715 = vmatpush.msra.mxu0 %v658
          %716 = vmatpush.msra.mxu0 %v656
          %717 = vmatpush.msra.mxu0 %v654
          %718 = vmatpush.msra.mxu0 %v652
          %719 = vmatpush.msra.mxu0 %v650
          %720 = vmatpush.msra.mxu0 %v648
          %721 = vmatmul.f32.gmra.mxu0 %v646
          %v722 = vpop.f32.mrf.mxu0
          %v723 = vadd.f32 %v682, %v722
          %724 = vdwg.mxu0
          %vm725 = vcmp.gt.f32.partialorder %v703, 0.0
          %vm726 = vcmp.gt.f32.partialorder %v723, 0.0
          %s727 = sld [smem:[#allocation4]]
          %v728 = vstv %s727
          %v729 = vmul.f32 %v728, %v703
          %v730 = vmul.f32 %v728, %v723
          %v731 = vsel %vm725, %v703, %v729
          %v732 = vsel %vm726, %v723, %v730
          %v733 = vld [vmem:[#allocation15] sm:$0xff]
          %v734 = vld [vmem:[#allocation15 + $0x8] sm:$0xff]
          %v735 = vld [vmem:[#allocation15 + $0x10] sm:$0xff]
          %v736 = vld [vmem:[#allocation15 + $0x18] sm:$0xff]
          %v737 = vld [vmem:[#allocation15 + $0x20] sm:$0xff]
          %v738 = vld [vmem:[#allocation15 + $0x28] sm:$0xff]
          %v739 = vld [vmem:[#allocation15 + $0x30] sm:$0xff]
          %v740 = vld [vmem:[#allocation15 + $0x38] sm:$0xff]
          %v741 = vld [vmem:[#allocation15 + $0x40] sm:$0xff]
          %v742 = vld [vmem:[#allocation15 + $0x48] sm:$0xff]
          %v743 = vld [vmem:[#allocation15 + $0x50] sm:$0xff]
          %v744 = vld [vmem:[#allocation15 + $0x58] sm:$0xff]
          %v745 = vld [vmem:[#allocation15 + $0x60] sm:$0xff]
          %v746 = vld [vmem:[#allocation15 + $0x68] sm:$0xff]
          %v747 = vld [vmem:[#allocation15 + $0x70] sm:$0xff]
          %v748 = vld [vmem:[#allocation15 + $0x78] sm:$0xff]
          %v749 = vld [vmem:[#allocation15 + $0x80] sm:$0xff]
          %v750 = vld [vmem:[#allocation15 + $0x88] sm:$0xff]
          %v751 = vld [vmem:[#allocation15 + $0x90] sm:$0xff]
          %v752 = vld [vmem:[#allocation15 + $0x98] sm:$0xff]
          %v753 = vld [vmem:[#allocation15 + $0xa0] sm:$0xff]
          %v754 = vld [vmem:[#allocation15 + $0xa8] sm:$0xff]
          %v755 = vld [vmem:[#allocation15 + $0xb0] sm:$0xff]
          %v756 = vld [vmem:[#allocation15 + $0xb8] sm:$0xff]
          %v757 = vld [vmem:[#allocation15 + $0xc0] sm:$0xff]
          %v758 = vld [vmem:[#allocation15 + $0xc8] sm:$0xff]
          %v759 = vld [vmem:[#allocation15 + $0xd0] sm:$0xff]
          %v760 = vld [vmem:[#allocation15 + $0xd8] sm:$0xff]
          %v761 = vld [vmem:[#allocation15 + $0xe0] sm:$0xff]
          %v762 = vld [vmem:[#allocation15 + $0xe8] sm:$0xff]
          %v763 = vld [vmem:[#allocation15 + $0xf0] sm:$0xff]
          %v764 = vld [vmem:[#allocation15 + $0xf8] sm:$0xff]
          %v765 = vld [vmem:[#allocation15 + $0x100] sm:$0xff]
          %v766 = vld [vmem:[#allocation15 + $0x108] sm:$0xff]
          %v767 = vld [vmem:[#allocation15 + $0x110] sm:$0xff]
          %v768 = vld [vmem:[#allocation15 + $0x118] sm:$0xff]
          %v769 = vld [vmem:[#allocation15 + $0x120] sm:$0xff]
          %v770 = vld [vmem:[#allocation15 + $0x128] sm:$0xff]
          %v771 = vld [vmem:[#allocation15 + $0x130] sm:$0xff]
          %v772 = vld [vmem:[#allocation15 + $0x138] sm:$0xff]
          %v773 = vld [vmem:[#allocation15 + $0x140] sm:$0xff]
          %v774 = vld [vmem:[#allocation15 + $0x148] sm:$0xff]
          %v775 = vld [vmem:[#allocation15 + $0x150] sm:$0xff]
          %v776 = vld [vmem:[#allocation15 + $0x158] sm:$0xff]
          %v777 = vld [vmem:[#allocation15 + $0x160] sm:$0xff]
          %v778 = vld [vmem:[#allocation15 + $0x168] sm:$0xff]
          %v779 = vld [vmem:[#allocation15 + $0x170] sm:$0xff]
          %v780 = vld [vmem:[#allocation15 + $0x178] sm:$0xff]
          %v781 = vld [vmem:[#allocation15 + $0x180] sm:$0xff]
          %v782 = vld [vmem:[#allocation15 + $0x188] sm:$0xff]
          %v783 = vld [vmem:[#allocation15 + $0x190] sm:$0xff]
          %v784 = vld [vmem:[#allocation15 + $0x198] sm:$0xff]
          %v785 = vld [vmem:[#allocation15 + $0x1a0] sm:$0xff]
          %v786 = vld [vmem:[#allocation15 + $0x1a8] sm:$0xff]
          %v787 = vld [vmem:[#allocation15 + $0x1b0] sm:$0xff]
          %v788 = vld [vmem:[#allocation15 + $0x1b8] sm:$0xff]
          %v789 = vld [vmem:[#allocation15 + $0x1c0] sm:$0xff]
          %v790 = vld [vmem:[#allocation15 + $0x1c8] sm:$0xff]
          %v791 = vld [vmem:[#allocation15 + $0x1d0] sm:$0xff]
          %v792 = vld [vmem:[#allocation15 + $0x1d8] sm:$0xff]
          %v793 = vld [vmem:[#allocation15 + $0x1e0] sm:$0xff]
          %v794 = vld [vmem:[#allocation15 + $0x1e8] sm:$0xff]
          %v795 = vld [vmem:[#allocation15 + $0x1f0] sm:$0xff]
          %v796 = vld [vmem:[#allocation15 + $0x1f8] sm:$0xff]
          %v797 = vld [vmem:[#allocation15 + $0x200] sm:$0xff]
          %v798 = vld [vmem:[#allocation15 + $0x208] sm:$0xff]
          %v799 = vld [vmem:[#allocation15 + $0x210] sm:$0xff]
          %v800 = vld [vmem:[#allocation15 + $0x218] sm:$0xff]
          %v801 = vld [vmem:[#allocation15 + $0x220] sm:$0xff]
          %v802 = vld [vmem:[#allocation15 + $0x228] sm:$0xff]
          %v803 = vld [vmem:[#allocation15 + $0x230] sm:$0xff]
          %v804 = vld [vmem:[#allocation15 + $0x238] sm:$0xff]
          %v805 = vld [vmem:[#allocation15 + $0x240] sm:$0xff]
          %v806 = vld [vmem:[#allocation15 + $0x248] sm:$0xff]
          %v807 = vld [vmem:[#allocation15 + $0x250] sm:$0xff]
          %v808 = vld [vmem:[#allocation15 + $0x258] sm:$0xff]
          %v809 = vld [vmem:[#allocation15 + $0x260] sm:$0xff]
          %v810 = vld [vmem:[#allocation15 + $0x268] sm:$0xff]
          %v811 = vld [vmem:[#allocation15 + $0x270] sm:$0xff]
          %v812 = vld [vmem:[#allocation15 + $0x278] sm:$0xff]
          %v813 = vld [vmem:[#allocation15 + $0x280] sm:$0xff]
          %v814 = vld [vmem:[#allocation15 + $0x288] sm:$0xff]
          %v815 = vld [vmem:[#allocation15 + $0x290] sm:$0xff]
          %v816 = vld [vmem:[#allocation15 + $0x298] sm:$0xff]
          %v817 = vld [vmem:[#allocation15 + $0x2a0] sm:$0xff]
          %v818 = vld [vmem:[#allocation15 + $0x2a8] sm:$0xff]
          %v819 = vld [vmem:[#allocation15 + $0x2b0] sm:$0xff]
          %v820 = vld [vmem:[#allocation15 + $0x2b8] sm:$0xff]
          %v821 = vld [vmem:[#allocation15 + $0x2c0] sm:$0xff]
          %v822 = vld [vmem:[#allocation15 + $0x2c8] sm:$0xff]
          %v823 = vld [vmem:[#allocation15 + $0x2d0] sm:$0xff]
          %v824 = vld [vmem:[#allocation15 + $0x2d8] sm:$0xff]
          %v825 = vld [vmem:[#allocation15 + $0x2e0] sm:$0xff]
          %v826 = vld [vmem:[#allocation15 + $0x2e8] sm:$0xff]
          %v827 = vld [vmem:[#allocation15 + $0x2f0] sm:$0xff]
          %v828 = vld [vmem:[#allocation15 + $0x2f8] sm:$0xff]
          %v829 = vld [vmem:[#allocation15 + $0x300] sm:$0xff]
          %v830 = vld [vmem:[#allocation15 + $0x308] sm:$0xff]
          %v831 = vld [vmem:[#allocation15 + $0x310] sm:$0xff]
          %v832 = vld [vmem:[#allocation15 + $0x318] sm:$0xff]
          %v833 = vld [vmem:[#allocation15 + $0x320] sm:$0xff]
          %v834 = vld [vmem:[#allocation15 + $0x328] sm:$0xff]
          %v835 = vld [vmem:[#allocation15 + $0x330] sm:$0xff]
          %v836 = vld [vmem:[#allocation15 + $0x338] sm:$0xff]
          %v837 = vld [vmem:[#allocation15 + $0x340] sm:$0xff]
          %v838 = vld [vmem:[#allocation15 + $0x348] sm:$0xff]
          %v839 = vld [vmem:[#allocation15 + $0x350] sm:$0xff]
          %v840 = vld [vmem:[#allocation15 + $0x358] sm:$0xff]
          %v841 = vld [vmem:[#allocation15 + $0x360] sm:$0xff]
          %v842 = vld [vmem:[#allocation15 + $0x368] sm:$0xff]
          %v843 = vld [vmem:[#allocation15 + $0x370] sm:$0xff]
          %v844 = vld [vmem:[#allocation15 + $0x378] sm:$0xff]
          %v845 = vld [vmem:[#allocation15 + $0x380] sm:$0xff]
          %v846 = vld [vmem:[#allocation15 + $0x388] sm:$0xff]
          %v847 = vld [vmem:[#allocation15 + $0x390] sm:$0xff]
          %v848 = vld [vmem:[#allocation15 + $0x398] sm:$0xff]
          %v849 = vld [vmem:[#allocation15 + $0x3a0] sm:$0xff]
          %v850 = vld [vmem:[#allocation15 + $0x3a8] sm:$0xff]
          %v851 = vld [vmem:[#allocation15 + $0x3b0] sm:$0xff]
          %v852 = vld [vmem:[#allocation15 + $0x3b8] sm:$0xff]
          %v853 = vld [vmem:[#allocation15 + $0x3c0] sm:$0xff]
          %v854 = vld [vmem:[#allocation15 + $0x3c8] sm:$0xff]
          %v855 = vld [vmem:[#allocation15 + $0x3d0] sm:$0xff]
          %v856 = vld [vmem:[#allocation15 + $0x3d8] sm:$0xff]
          %v857 = vld [vmem:[#allocation15 + $0x3e0] sm:$0xff]
          %v858 = vld [vmem:[#allocation15 + $0x3e8] sm:$0xff]
          %v859 = vld [vmem:[#allocation15 + $0x3f0] sm:$0xff]
          %v860 = vld [vmem:[#allocation15 + $0x3f8] sm:$0xff]
          %v861 = vld [vmem:[#allocation17] sm:$0xf]
          %v863 = vperm.slane %v861, 0
          %v864 = vperm.slane %v861, 1
          %v865 = vperm.slane %v861, 2
          %v866 = vperm.slane %v861, 3
          %871 = vmatpush.msra.mxu0 %v793
          %872 = vmatpush.msra.mxu0 %v789
          %873 = vmatpush.msra.mxu0 %v785
          %874 = vmatpush.msra.mxu0 %v781
          %875 = vmatpush.msra.mxu0 %v777
          %876 = vmatpush.msra.mxu0 %v773
          %877 = vmatpush.msra.mxu0 %v769
          %878 = vmatpush.msra.mxu0 %v765
          %879 = vmatpush.msra.mxu0 %v761
          %880 = vmatpush.msra.mxu0 %v757
          %881 = vmatpush.msra.mxu0 %v753
          %882 = vmatpush.msra.mxu0 %v749
          %883 = vmatpush.msra.mxu0 %v745
          %884 = vmatpush.msra.mxu0 %v741
          %885 = vmatpush.msra.mxu0 %v737
          %886 = vmatpush.msra.mxu0 %v733
          %887 = vmatmul.f32.gmra.mxu0 %v731
          %v888 = vpop.f32.mrf.mxu0
          %v889 = vadd.f32 %v863, %v888
          %890 = vdwg.mxu0
          %891 = vmatpush.msra.mxu0 %v857
          %892 = vmatpush.msra.mxu0 %v853
          %893 = vmatpush.msra.mxu0 %v849
          %894 = vmatpush.msra.mxu0 %v845
          %895 = vmatpush.msra.mxu0 %v841
          %896 = vmatpush.msra.mxu0 %v837
          %897 = vmatpush.msra.mxu0 %v833
          %898 = vmatpush.msra.mxu0 %v829
          %899 = vmatpush.msra.mxu0 %v825
          %900 = vmatpush.msra.mxu0 %v821
          %901 = vmatpush.msra.mxu0 %v817
          %902 = vmatpush.msra.mxu0 %v813
          %903 = vmatpush.msra.mxu0 %v809
          %904 = vmatpush.msra.mxu0 %v805
          %905 = vmatpush.msra.mxu0 %v801
          %906 = vmatpush.msra.mxu0 %v797
          %907 = vmatmul.f32.gmra.mxu0 %v732
          %v908 = vpop.f32.mrf.mxu0
          %v909 = vadd.f32 %v889, %v908
          %910 = vdwg.mxu0
          %911 = vmatpush.msra.mxu0 %v794
          %912 = vmatpush.msra.mxu0 %v790
          %913 = vmatpush.msra.mxu0 %v786
          %914 = vmatpush.msra.mxu0 %v782
          %915 = vmatpush.msra.mxu0 %v778
          %916 = vmatpush.msra.mxu0 %v774
          %917 = vmatpush.msra.mxu0 %v770
          %918 = vmatpush.msra.mxu0 %v766
          %919 = vmatpush.msra.mxu0 %v762
          %920 = vmatpush.msra.mxu0 %v758
          %921 = vmatpush.msra.mxu0 %v754
          %922 = vmatpush.msra.mxu0 %v750
          %923 = vmatpush.msra.mxu0 %v746
          %924 = vmatpush.msra.mxu0 %v742
          %925 = vmatpush.msra.mxu0 %v738
          %926 = vmatpush.msra.mxu0 %v734
          %927 = vmatmul.f32.gmra.mxu0 %v731
          %v928 = vpop.f32.mrf.mxu0
          %v929 = vadd.f32 %v864, %v928
          %930 = vdwg.mxu0
          %931 = vmatpush.msra.mxu0 %v858
          %932 = vmatpush.msra.mxu0 %v854
          %933 = vmatpush.msra.mxu0 %v850
          %934 = vmatpush.msra.mxu0 %v846
          %935 = vmatpush.msra.mxu0 %v842
          %936 = vmatpush.msra.mxu0 %v838
          %937 = vmatpush.msra.mxu0 %v834
          %938 = vmatpush.msra.mxu0 %v830
          %939 = vmatpush.msra.mxu0 %v826
          %940 = vmatpush.msra.mxu0 %v822
          %941 = vmatpush.msra.mxu0 %v818
          %942 = vmatpush.msra.mxu0 %v814
          %943 = vmatpush.msra.mxu0 %v810
          %944 = vmatpush.msra.mxu0 %v806
          %945 = vmatpush.msra.mxu0 %v802
          %946 = vmatpush.msra.mxu0 %v798
          %947 = vmatmul.f32.gmra.mxu0 %v732
          %v948 = vpop.f32.mrf.mxu0
          %v949 = vadd.f32 %v929, %v948
          %950 = vdwg.mxu0
          %951 = vmatpush.msra.mxu0 %v795
          %952 = vmatpush.msra.mxu0 %v791
          %953 = vmatpush.msra.mxu0 %v787
          %954 = vmatpush.msra.mxu0 %v783
          %955 = vmatpush.msra.mxu0 %v779
          %956 = vmatpush.msra.mxu0 %v775
          %957 = vmatpush.msra.mxu0 %v771
          %958 = vmatpush.msra.mxu0 %v767
          %959 = vmatpush.msra.mxu0 %v763
          %960 = vmatpush.msra.mxu0 %v759
          %961 = vmatpush.msra.mxu0 %v755
          %962 = vmatpush.msra.mxu0 %v751
          %963 = vmatpush.msra.mxu0 %v747
          %964 = vmatpush.msra.mxu0 %v743
          %965 = vmatpush.msra.mxu0 %v739
          %966 = vmatpush.msra.mxu0 %v735
          %967 = vmatmul.f32.gmra.mxu0 %v731
          %v968 = vpop.f32.mrf.mxu0
          %v969 = vadd.f32 %v865, %v968
          %970 = vdwg.mxu0
          %971 = vmatpush.msra.mxu0 %v859
          %972 = vmatpush.msra.mxu0 %v855
          %973 = vmatpush.msra.mxu0 %v851
          %974 = vmatpush.msra.mxu0 %v847
          %975 = vmatpush.msra.mxu0 %v843
          %976 = vmatpush.msra.mxu0 %v839
          %977 = vmatpush.msra.mxu0 %v835
          %978 = vmatpush.msra.mxu0 %v831
          %979 = vmatpush.msra.mxu0 %v827
          %980 = vmatpush.msra.mxu0 %v823
          %981 = vmatpush.msra.mxu0 %v819
          %982 = vmatpush.msra.mxu0 %v815
          %983 = vmatpush.msra.mxu0 %v811
          %984 = vmatpush.msra.mxu0 %v807
          %985 = vmatpush.msra.mxu0 %v803
          %986 = vmatpush.msra.mxu0 %v799
          %987 = vmatmul.f32.gmra.mxu0 %v732
          %v988 = vpop.f32.mrf.mxu0
          %v989 = vadd.f32 %v969, %v988
          %990 = vdwg.mxu0
          %991 = vmatpush.msra.mxu0 %v796
          %992 = vmatpush.msra.mxu0 %v792
          %993 = vmatpush.msra.mxu0 %v788
          %994 = vmatpush.msra.mxu0 %v784
          %995 = vmatpush.msra.mxu0 %v780
          %996 = vmatpush.msra.mxu0 %v776
          %997 = vmatpush.msra.mxu0 %v772
          %998 = vmatpush.msra.mxu0 %v768
          %999 = vmatpush.msra.mxu0 %v764
          %1000 = vmatpush.msra.mxu0 %v760
          %1001 = vmatpush.msra.mxu0 %v756
          %1002 = vmatpush.msra.mxu0 %v752
          %1003 = vmatpush.msra.mxu0 %v748
          %1004 = vmatpush.msra.mxu0 %v744
          %1005 = vmatpush.msra.mxu0 %v740
          %1006 = vmatpush.msra.mxu0 %v736
          %1007 = vmatmul.f32.gmra.mxu0 %v731
          %v1008 = vpop.f32.mrf.mxu0
          %v1009 = vadd.f32 %v866, %v1008
          %1010 = vdwg.mxu0
          %1011 = vmatpush.msra.mxu0 %v860
          %1012 = vmatpush.msra.mxu0 %v856
          %1013 = vmatpush.msra.mxu0 %v852
          %1014 = vmatpush.msra.mxu0 %v848
          %1015 = vmatpush.msra.mxu0 %v844
          %1016 = vmatpush.msra.mxu0 %v840
          %1017 = vmatpush.msra.mxu0 %v836
          %1018 = vmatpush.msra.mxu0 %v832
          %1019 = vmatpush.msra.mxu0 %v828
          %1020 = vmatpush.msra.mxu0 %v824
          %1021 = vmatpush.msra.mxu0 %v820
          %1022 = vmatpush.msra.mxu0 %v816
          %1023 = vmatpush.msra.mxu0 %v812
          %1024 = vmatpush.msra.mxu0 %v808
          %1025 = vmatpush.msra.mxu0 %v804
          %1026 = vmatpush.msra.mxu0 %v800
          %1027 = vmatmul.f32.gmra.mxu0 %v732
          %v1028 = vpop.f32.mrf.mxu0
          %v1029 = vadd.f32 %v1009, %v1028
          %1030 = vdwg.mxu0
          %vm1031 = vcmp.gt.f32.partialorder %v909, 0.0
          %vm1032 = vcmp.gt.f32.partialorder %v949, 0.0
          %vm1033 = vcmp.gt.f32.partialorder %v989, 0.0
          %vm1034 = vcmp.gt.f32.partialorder %v1029, 0.0
          %s1035 = sld [smem:[#allocation5]]
          %v1036 = vstv %s1035
          %v1037 = vmul.f32 %v1036, %v909
          %v1038 = vmul.f32 %v1036, %v949
          %v1039 = vmul.f32 %v1036, %v989
          %v1040 = vmul.f32 %v1036, %v1029
          %v1041 = vsel %vm1031, %v909, %v1037
          %v1042 = vsel %vm1032, %v949, %v1038
          %v1043 = vsel %vm1033, %v989, %v1039
          %v1044 = vsel %vm1034, %v1029, %v1040
          %1045 = vst [vmem:[#allocation2] sm:$0xff] %v1041
          %1046 = vst [vmem:[#allocation2 + $0x8] sm:$0xff] %v1042
          %1047 = vst [vmem:[#allocation2 + $0x10] sm:$0xff] %v1043
          %1048 = vst [vmem:[#allocation2 + $0x18] sm:$0xff] %v1044
        $region108: #{tpu_custom_call.1} parent=67 // pred_fallthru
          _
        %v1049 = vld [vmem:[#allocation2] sm:$0xff]
        %v1050 = vld [vmem:[#allocation2 + $0x8] sm:$0xff]
        %v1051 = vld [vmem:[#allocation2 + $0x10] sm:$0xff]
        %v1052 = vld [vmem:[#allocation2 + $0x18] sm:$0xff]
        %v1053 = vld [vmem:[%s545] sm:$0xff]
        %v1054 = vld [vmem:[%s545 + $0x8] sm:$0xff]
        %v1055 = vld [vmem:[%s545 + $0x10] sm:$0xff]
        %v1056 = vld [vmem:[%s545 + $0x18] sm:$0xff]
        %v1057 = vld [vmem:[%s545 + $0x20] sm:$0xff]
        %v1058 = vld [vmem:[%s545 + $0x28] sm:$0xff]
        %v1059 = vld [vmem:[%s545 + $0x30] sm:$0xff]
        %v1060 = vld [vmem:[%s545 + $0x38] sm:$0xff]
        %v1061 = vld [vmem:[%s545 + $0x40] sm:$0xff]
        %v1062 = vld [vmem:[%s545 + $0x48] sm:$0xff]
        %v1063 = vld [vmem:[%s545 + $0x50] sm:$0xff]
        %v1064 = vld [vmem:[%s545 + $0x58] sm:$0xff]
        %v1065 = vld [vmem:[%s545 + $0x60] sm:$0xff]
        %v1066 = vld [vmem:[%s545 + $0x68] sm:$0xff]
        %v1067 = vld [vmem:[%s545 + $0x70] sm:$0xff]
        %v1068 = vld [vmem:[%s545 + $0x78] sm:$0xff]
        %v1069 = vld [vmem:[%s545 + $0x80] sm:$0xff]
        %v1070 = vld [vmem:[%s545 + $0x88] sm:$0xff]
        %v1071 = vld [vmem:[%s545 + $0x90] sm:$0xff]
        %v1072 = vld [vmem:[%s545 + $0x98] sm:$0xff]
        %v1073 = vld [vmem:[%s545 + $0xa0] sm:$0xff]
        %v1074 = vld [vmem:[%s545 + $0xa8] sm:$0xff]
        %v1075 = vld [vmem:[%s545 + $0xb0] sm:$0xff]
        %v1076 = vld [vmem:[%s545 + $0xb8] sm:$0xff]
        %v1077 = vld [vmem:[%s545 + $0xc0] sm:$0xff]
        %v1078 = vld [vmem:[%s545 + $0xc8] sm:$0xff]
        %v1079 = vld [vmem:[%s545 + $0xd0] sm:$0xff]
        %v1080 = vld [vmem:[%s545 + $0xd8] sm:$0xff]
        %v1081 = vld [vmem:[%s545 + $0xe0] sm:$0xff]
        %v1082 = vld [vmem:[%s545 + $0xe8] sm:$0xff]
        %v1083 = vld [vmem:[%s545 + $0xf0] sm:$0xff]
        %v1084 = vld [vmem:[%s545 + $0xf8] sm:$0xff]
        %v1085 = vld [vmem:[%s545 + $0x100] sm:$0xff]
        %v1086 = vld [vmem:[%s545 + $0x108] sm:$0xff]
        %v1087 = vld [vmem:[%s545 + $0x110] sm:$0xff]
        %v1088 = vld [vmem:[%s545 + $0x118] sm:$0xff]
        %v1089 = vld [vmem:[%s545 + $0x120] sm:$0xff]
        %v1090 = vld [vmem:[%s545 + $0x128] sm:$0xff]
        %v1091 = vld [vmem:[%s545 + $0x130] sm:$0xff]
        %v1092 = vld [vmem:[%s545 + $0x138] sm:$0xff]
        %v1093 = vld [vmem:[%s545 + $0x140] sm:$0xff]
        %v1094 = vld [vmem:[%s545 + $0x148] sm:$0xff]
        %v1095 = vld [vmem:[%s545 + $0x150] sm:$0xff]
        %v1096 = vld [vmem:[%s545 + $0x158] sm:$0xff]
        %v1097 = vld [vmem:[%s545 + $0x160] sm:$0xff]
        %v1098 = vld [vmem:[%s545 + $0x168] sm:$0xff]
        %v1099 = vld [vmem:[%s545 + $0x170] sm:$0xff]
        %v1100 = vld [vmem:[%s545 + $0x178] sm:$0xff]
        %v1101 = vld [vmem:[%s545 + $0x180] sm:$0xff]
        %v1102 = vld [vmem:[%s545 + $0x188] sm:$0xff]
        %v1103 = vld [vmem:[%s545 + $0x190] sm:$0xff]
        %v1104 = vld [vmem:[%s545 + $0x198] sm:$0xff]
        %v1105 = vld [vmem:[%s545 + $0x1a0] sm:$0xff]
        %v1106 = vld [vmem:[%s545 + $0x1a8] sm:$0xff]
        %v1107 = vld [vmem:[%s545 + $0x1b0] sm:$0xff]
        %v1108 = vld [vmem:[%s545 + $0x1b8] sm:$0xff]
        %v1109 = vld [vmem:[%s545 + $0x1c0] sm:$0xff]
        %v1110 = vld [vmem:[%s545 + $0x1c8] sm:$0xff]
        %v1111 = vld [vmem:[%s545 + $0x1d0] sm:$0xff]
        %v1112 = vld [vmem:[%s545 + $0x1d8] sm:$0xff]
        %v1113 = vld [vmem:[%s545 + $0x1e0] sm:$0xff]
        %v1114 = vld [vmem:[%s545 + $0x1e8] sm:$0xff]
        %v1115 = vld [vmem:[%s545 + $0x1f0] sm:$0xff]
        %v1116 = vld [vmem:[%s545 + $0x1f8] sm:$0xff]
        %v1117 = vld [vmem:[%s545 + $0x200] sm:$0xff]
        %v1118 = vld [vmem:[%s545 + $0x208] sm:$0xff]
        %v1119 = vld [vmem:[%s545 + $0x210] sm:$0xff]
        %v1120 = vld [vmem:[%s545 + $0x218] sm:$0xff]
        %v1121 = vld [vmem:[%s545 + $0x220] sm:$0xff]
        %v1122 = vld [vmem:[%s545 + $0x228] sm:$0xff]
        %v1123 = vld [vmem:[%s545 + $0x230] sm:$0xff]
        %v1124 = vld [vmem:[%s545 + $0x238] sm:$0xff]
        %v1125 = vld [vmem:[%s545 + $0x240] sm:$0xff]
        %v1126 = vld [vmem:[%s545 + $0x248] sm:$0xff]
        %v1127 = vld [vmem:[%s545 + $0x250] sm:$0xff]
        %v1128 = vld [vmem:[%s545 + $0x258] sm:$0xff]
        %v1129 = vld [vmem:[%s545 + $0x260] sm:$0xff]
        %v1130 = vld [vmem:[%s545 + $0x268] sm:$0xff]
        %v1131 = vld [vmem:[%s545 + $0x270] sm:$0xff]
        %v1132 = vld [vmem:[%s545 + $0x278] sm:$0xff]
        %v1133 = vld [vmem:[%s545 + $0x280] sm:$0xff]
        %v1134 = vld [vmem:[%s545 + $0x288] sm:$0xff]
        %v1135 = vld [vmem:[%s545 + $0x290] sm:$0xff]
        %v1136 = vld [vmem:[%s545 + $0x298] sm:$0xff]
        %v1137 = vld [vmem:[%s545 + $0x2a0] sm:$0xff]
        %v1138 = vld [vmem:[%s545 + $0x2a8] sm:$0xff]
        %v1139 = vld [vmem:[%s545 + $0x2b0] sm:$0xff]
        %v1140 = vld [vmem:[%s545 + $0x2b8] sm:$0xff]
        %v1141 = vld [vmem:[%s545 + $0x2c0] sm:$0xff]
        %v1142 = vld [vmem:[%s545 + $0x2c8] sm:$0xff]
        %v1143 = vld [vmem:[%s545 + $0x2d0] sm:$0xff]
        %v1144 = vld [vmem:[%s545 + $0x2d8] sm:$0xff]
        %v1145 = vld [vmem:[%s545 + $0x2e0] sm:$0xff]
        %v1146 = vld [vmem:[%s545 + $0x2e8] sm:$0xff]
        %v1147 = vld [vmem:[%s545 + $0x2f0] sm:$0xff]
        %v1148 = vld [vmem:[%s545 + $0x2f8] sm:$0xff]
        %v1149 = vld [vmem:[%s545 + $0x300] sm:$0xff]
        %v1150 = vld [vmem:[%s545 + $0x308] sm:$0xff]
        %v1151 = vld [vmem:[%s545 + $0x310] sm:$0xff]
        %v1152 = vld [vmem:[%s545 + $0x318] sm:$0xff]
        %v1153 = vld [vmem:[%s545 + $0x320] sm:$0xff]
        %v1154 = vld [vmem:[%s545 + $0x328] sm:$0xff]
        %v1155 = vld [vmem:[%s545 + $0x330] sm:$0xff]
        %v1156 = vld [vmem:[%s545 + $0x338] sm:$0xff]
        %v1157 = vld [vmem:[%s545 + $0x340] sm:$0xff]
        %v1158 = vld [vmem:[%s545 + $0x348] sm:$0xff]
        %v1159 = vld [vmem:[%s545 + $0x350] sm:$0xff]
        %v1160 = vld [vmem:[%s545 + $0x358] sm:$0xff]
        %v1161 = vld [vmem:[%s545 + $0x360] sm:$0xff]
        %v1162 = vld [vmem:[%s545 + $0x368] sm:$0xff]
        %v1163 = vld [vmem:[%s545 + $0x370] sm:$0xff]
        %v1164 = vld [vmem:[%s545 + $0x378] sm:$0xff]
        %v1165 = vld [vmem:[%s545 + $0x380] sm:$0xff]
        %v1166 = vld [vmem:[%s545 + $0x388] sm:$0xff]
        %v1167 = vld [vmem:[%s545 + $0x390] sm:$0xff]
        %v1168 = vld [vmem:[%s545 + $0x398] sm:$0xff]
        %v1169 = vld [vmem:[%s545 + $0x3a0] sm:$0xff]
        %v1170 = vld [vmem:[%s545 + $0x3a8] sm:$0xff]
        %v1171 = vld [vmem:[%s545 + $0x3b0] sm:$0xff]
        %v1172 = vld [vmem:[%s545 + $0x3b8] sm:$0xff]
        %v1173 = vld [vmem:[%s545 + $0x3c0] sm:$0xff]
        %v1174 = vld [vmem:[%s545 + $0x3c8] sm:$0xff]
        %v1175 = vld [vmem:[%s545 + $0x3d0] sm:$0xff]
        %v1176 = vld [vmem:[%s545 + $0x3d8] sm:$0xff]
        %v1177 = vld [vmem:[%s545 + $0x3e0] sm:$0xff]
        %v1178 = vld [vmem:[%s545 + $0x3e8] sm:$0xff]
        %v1179 = vld [vmem:[%s545 + $0x3f0] sm:$0xff]
        %v1180 = vld [vmem:[%s545 + $0x3f8] sm:$0xff]
        %v1181 = vld [vmem:[%s555] sm:$0x3]
        %v1183 = vperm.slane %v1181, 0
        %v1184 = vperm.slane %v1181, 1
        %1187 = vmatpush.msra.mxu0 %v1083
        %1188 = vmatpush.msra.mxu0 %v1081
        %1189 = vmatpush.msra.mxu0 %v1079
        %1190 = vmatpush.msra.mxu0 %v1077
        %1191 = vmatpush.msra.mxu0 %v1075
        %1192 = vmatpush.msra.mxu0 %v1073
        %1193 = vmatpush.msra.mxu0 %v1071
        %1194 = vmatpush.msra.mxu0 %v1069
        %1195 = vmatpush.msra.mxu0 %v1067
        %1196 = vmatpush.msra.mxu0 %v1065
        %1197 = vmatpush.msra.mxu0 %v1063
        %1198 = vmatpush.msra.mxu0 %v1061
        %1199 = vmatpush.msra.mxu0 %v1059
        %1200 = vmatpush.msra.mxu0 %v1057
        %1201 = vmatpush.msra.mxu0 %v1055
        %1202 = vmatpush.msra.mxu0 %v1053
        %1203 = vmatmul.f32.gmra.mxu0 %v1049
        %v1204 = vpop.f32.mrf.mxu0
        %v1205 = vadd.f32 %v1183, %v1204
        %1206 = vdwg.mxu0
        %1207 = vmatpush.msra.mxu0 %v1115
        %1208 = vmatpush.msra.mxu0 %v1113
        %1209 = vmatpush.msra.mxu0 %v1111
        %1210 = vmatpush.msra.mxu0 %v1109
        %1211 = vmatpush.msra.mxu0 %v1107
        %1212 = vmatpush.msra.mxu0 %v1105
        %1213 = vmatpush.msra.mxu0 %v1103
        %1214 = vmatpush.msra.mxu0 %v1101
        %1215 = vmatpush.msra.mxu0 %v1099
        %1216 = vmatpush.msra.mxu0 %v1097
        %1217 = vmatpush.msra.mxu0 %v1095
        %1218 = vmatpush.msra.mxu0 %v1093
        %1219 = vmatpush.msra.mxu0 %v1091
        %1220 = vmatpush.msra.mxu0 %v1089
        %1221 = vmatpush.msra.mxu0 %v1087
        %1222 = vmatpush.msra.mxu0 %v1085
        %1223 = vmatmul.f32.gmra.mxu0 %v1050
        %v1224 = vpop.f32.mrf.mxu0
        %v1225 = vadd.f32 %v1205, %v1224
        %1226 = vdwg.mxu0
        %1227 = vmatpush.msra.mxu0 %v1147
        %1228 = vmatpush.msra.mxu0 %v1145
        %1229 = vmatpush.msra.mxu0 %v1143
        %1230 = vmatpush.msra.mxu0 %v1141
        %1231 = vmatpush.msra.mxu0 %v1139
        %1232 = vmatpush.msra.mxu0 %v1137
        %1233 = vmatpush.msra.mxu0 %v1135
        %1234 = vmatpush.msra.mxu0 %v1133
        %1235 = vmatpush.msra.mxu0 %v1131
        %1236 = vmatpush.msra.mxu0 %v1129
        %1237 = vmatpush.msra.mxu0 %v1127
        %1238 = vmatpush.msra.mxu0 %v1125
        %1239 = vmatpush.msra.mxu0 %v1123
        %1240 = vmatpush.msra.mxu0 %v1121
        %1241 = vmatpush.msra.mxu0 %v1119
        %1242 = vmatpush.msra.mxu0 %v1117
        %1243 = vmatmul.f32.gmra.mxu0 %v1051
        %v1244 = vpop.f32.mrf.mxu0
        %v1245 = vadd.f32 %v1225, %v1244
        %1246 = vdwg.mxu0
        %1247 = vmatpush.msra.mxu0 %v1179
        %1248 = vmatpush.msra.mxu0 %v1177
        %1249 = vmatpush.msra.mxu0 %v1175
        %1250 = vmatpush.msra.mxu0 %v1173
        %1251 = vmatpush.msra.mxu0 %v1171
        %1252 = vmatpush.msra.mxu0 %v1169
        %1253 = vmatpush.msra.mxu0 %v1167
        %1254 = vmatpush.msra.mxu0 %v1165
        %1255 = vmatpush.msra.mxu0 %v1163
        %1256 = vmatpush.msra.mxu0 %v1161
        %1257 = vmatpush.msra.mxu0 %v1159
        %1258 = vmatpush.msra.mxu0 %v1157
        %1259 = vmatpush.msra.mxu0 %v1155
        %1260 = vmatpush.msra.mxu0 %v1153
        %1261 = vmatpush.msra.mxu0 %v1151
        %1262 = vmatpush.msra.mxu0 %v1149
        %1263 = vmatmul.f32.gmra.mxu0 %v1052
        %v1264 = vpop.f32.mrf.mxu0
        %v1265 = vadd.f32 %v1245, %v1264
        %1266 = vdwg.mxu0
        %1267 = vmatpush.msra.mxu0 %v1084
        %1268 = vmatpush.msra.mxu0 %v1082
        %1269 = vmatpush.msra.mxu0 %v1080
        %1270 = vmatpush.msra.mxu0 %v1078
        %1271 = vmatpush.msra.mxu0 %v1076
        %1272 = vmatpush.msra.mxu0 %v1074
        %1273 = vmatpush.msra.mxu0 %v1072
        %1274 = vmatpush.msra.mxu0 %v1070
        %1275 = vmatpush.msra.mxu0 %v1068
        %1276 = vmatpush.msra.mxu0 %v1066
        %1277 = vmatpush.msra.mxu0 %v1064
        %1278 = vmatpush.msra.mxu0 %v1062
        %1279 = vmatpush.msra.mxu0 %v1060
        %1280 = vmatpush.msra.mxu0 %v1058
        %1281 = vmatpush.msra.mxu0 %v1056
        %1282 = vmatpush.msra.mxu0 %v1054
        %1283 = vmatmul.f32.gmra.mxu0 %v1049
        %v1284 = vpop.f32.mrf.mxu0
        %v1285 = vadd.f32 %v1184, %v1284
        %1286 = vdwg.mxu0
        %1287 = vmatpush.msra.mxu0 %v1116
        %1288 = vmatpush.msra.mxu0 %v1114
        %1289 = vmatpush.msra.mxu0 %v1112
        %1290 = vmatpush.msra.mxu0 %v1110
        %1291 = vmatpush.msra.mxu0 %v1108
        %1292 = vmatpush.msra.mxu0 %v1106
        %1293 = vmatpush.msra.mxu0 %v1104
        %1294 = vmatpush.msra.mxu0 %v1102
        %1295 = vmatpush.msra.mxu0 %v1100
        %1296 = vmatpush.msra.mxu0 %v1098
        %1297 = vmatpush.msra.mxu0 %v1096
        %1298 = vmatpush.msra.mxu0 %v1094
        %1299 = vmatpush.msra.mxu0 %v1092
        %1300 = vmatpush.msra.mxu0 %v1090
        %1301 = vmatpush.msra.mxu0 %v1088
        %1302 = vmatpush.msra.mxu0 %v1086
        %1303 = vmatmul.f32.gmra.mxu0 %v1050
        %v1304 = vpop.f32.mrf.mxu0
        %v1305 = vadd.f32 %v1285, %v1304
        %1306 = vdwg.mxu0
        %1307 = vmatpush.msra.mxu0 %v1148
        %1308 = vmatpush.msra.mxu0 %v1146
        %1309 = vmatpush.msra.mxu0 %v1144
        %1310 = vmatpush.msra.mxu0 %v1142
        %1311 = vmatpush.msra.mxu0 %v1140
        %1312 = vmatpush.msra.mxu0 %v1138
        %1313 = vmatpush.msra.mxu0 %v1136
        %1314 = vmatpush.msra.mxu0 %v1134
        %1315 = vmatpush.msra.mxu0 %v1132
        %1316 = vmatpush.msra.mxu0 %v1130
        %1317 = vmatpush.msra.mxu0 %v1128
        %1318 = vmatpush.msra.mxu0 %v1126
        %1319 = vmatpush.msra.mxu0 %v1124
        %1320 = vmatpush.msra.mxu0 %v1122
        %1321 = vmatpush.msra.mxu0 %v1120
        %1322 = vmatpush.msra.mxu0 %v1118
        %1323 = vmatmul.f32.gmra.mxu0 %v1051
        %v1324 = vpop.f32.mrf.mxu0
        %v1325 = vadd.f32 %v1305, %v1324
        %1326 = vdwg.mxu0
        %1327 = vmatpush.msra.mxu0 %v1180
        %1328 = vmatpush.msra.mxu0 %v1178
        %1329 = vmatpush.msra.mxu0 %v1176
        %1330 = vmatpush.msra.mxu0 %v1174
        %1331 = vmatpush.msra.mxu0 %v1172
        %1332 = vmatpush.msra.mxu0 %v1170
        %1333 = vmatpush.msra.mxu0 %v1168
        %1334 = vmatpush.msra.mxu0 %v1166
        %1335 = vmatpush.msra.mxu0 %v1164
        %1336 = vmatpush.msra.mxu0 %v1162
        %1337 = vmatpush.msra.mxu0 %v1160
        %1338 = vmatpush.msra.mxu0 %v1158
        %1339 = vmatpush.msra.mxu0 %v1156
        %1340 = vmatpush.msra.mxu0 %v1154
        %1341 = vmatpush.msra.mxu0 %v1152
        %1342 = vmatpush.msra.mxu0 %v1150
        %1343 = vmatmul.f32.gmra.mxu0 %v1052
        %v1344 = vpop.f32.mrf.mxu0
        %v1345 = vadd.f32 %v1325, %v1344
        %1346 = vdwg.mxu0
        %1347 = vst [vmem:[%s601] sm:$0xff] %v1265
        %1348 = vst [vmem:[%s601 + $0x8] sm:$0xff] %v1345
        %s1349 = sand.u32 %s325, 1
        %s1350 = scalar_lea.sflag [#allocation8], %s1349
        %s1351 = sand.u32 %s325, 1
        %s1352 = smul.addr %s1351, 16
        %s1353 = scalar_lea.vmem [#allocation21], %s1352
        // Predicated region
        $region109: #{tpu_custom_call.1} parent=67 // pred_check
          %p1354 = pneg %p335
        $region110: #{tpu_custom_call.1} parent=67 // pred_check_branch
          %1356 = sbr.rel (%p1354) target = $region112
        $region111: #{tpu_custom_call.1} parent=67 // pred_region
          %s1357 = smul.u32 2, %s41
          %1359 = vsyncadd %s1350, 0
          %s1360 = smul.addr %s40, 22
          %s1361 = sadd.s32 %s1357, %s1360
          %s1362 = smul.addr %s1361, 8
          %s1363 = scalar_lea.hbm %s12, %s1362
          %s1365 = sshll.u32 %s1353, 4
          %s1366 = int_to_ptr.vmem [resolvable:$true] %s1365
          %s1367 = sshll.u32 %s1363, 4
          %s1368 = int_to_ptr.hbm [resolvable:$true] %s1367
          %1370 = dma.vmem_to_hbm [thread:$0]  %s1366, 256, %s1368, %s1350
        $region112: #{tpu_custom_call.1} parent=67 // pred_fallthru
          _
      $region68: #{tpu_custom_call.1} parent=5 // pred_fallthru
        _
      %p1371 = scmp.le.s32.totalorder 2, %s31
      // Predicated region
      $region113: #{tpu_custom_call.1} parent=5 // pred_check
        %p1372 = pneg %p1371
      $region114: #{tpu_custom_call.1} parent=5 // pred_check_branch
        %1374 = sbr.rel (%p1372) target = $region116
      $region115: #{tpu_custom_call.1} parent=5 // pred_region
        %s1375 = ssub.s32 %s31, 2
        // Predicated region
        $region117: #{tpu_custom_call.1} parent=115 // pred_check
          %p1376 = pneg %p341
        $region118: #{tpu_custom_call.1} parent=115 // pred_check_branch
          %1378 = sbr.rel (%p1376) target = $region120
        $region119: #{tpu_custom_call.1} parent=115 // pred_region
          %s1379 = sand.u32 %s326, 1
          %s1380 = scalar_lea.sflag [#allocation8], %s1379
          %s1381 = sand.u32 %s326, 1
          %s1382 = smul.addr %s1381, 16
          %s1383 = scalar_lea.vmem [#allocation21], %s1382
          %1385 = dma.done %s1380, 256
        $region120: #{tpu_custom_call.1} parent=115 // pred_fallthru
          _
      $region116: #{tpu_custom_call.1} parent=5 // pred_fallthru
        _
    $region6: #{tpu_custom_call.1} parent=1 // loop_footer
      %s35 = sadd.s32 1, %s31
    $region7: #{tpu_custom_call.1} parent=1 // loop_footer_branch
      %30 = sbr.rel target = $region3
    $region8: #{tpu_custom_call.1} parent=1 // loop_exit
      _
    %1386 = vsyncpa [#allocation7], 1
    %s1387 = scalar_lea.sflag [#allocation7], 1
    %1388 = vsyncpa %s1387, 1
    %1389 = vsyncpa [#allocation10], 1
    %1390 = vsyncpa [#allocation13], 1
    %1391 = vsyncpa [#allocation16], 1
    %1392 = vsyncpa [#allocation19], 1
    %s1393 = scalar_lea.sflag [#allocation19], 1
    %1394 = vsyncpa %s1393, 1
    %1395 = vsyncpa [#allocation8], 1
    %s1396 = scalar_lea.sflag [#allocation8], 1
    %1397 = vsyncpa %s1396, 1

</llo_original>
